<compile_context>
chip_gen: v7x
topology: tpu7x:2x2x1
jax: 0.10.0
libtpu: 0.0.40
codegen_flags: <defaults>
</compile_context>

<pallas_src>
import jax
import jax.numpy as jnp
from jax.experimental import pallas as pl
from jax.experimental.pallas import tpu as pltpu

TEMPERATURE = 0.07
WEIGHTS = {'info_nce': 1.0, 'cls': 0.5, 'bio': 0.1, 'cloth': 0.5, 'cloth_adv': 0.5}
EPS = 1e-12  # F.normalize eps


# --------------------------- in-kernel helpers ---------------------------

def _normalize(x):
    """Row-wise L2 normalize (matches F.normalize(x, dim=-1)) via rsqrt (EUP slot)."""
    sumsq = jnp.sum(x * x, axis=-1, keepdims=True)
    return x * jax.lax.rsqrt(jnp.maximum(sumsq, EPS * EPS))


def _matmul_bt(a, b):
    """a @ b.T without an explicit transpose (contract last dims) -> f32 accumulate."""
    return jax.lax.dot_general(a, b, (((1,), (1,)), ((), ())),
                               preferred_element_type=jnp.float32)


def _sum_all(x):
    """Reduce a 2-D array to shape (1, 1)."""
    return jnp.sum(jnp.sum(x, axis=1, keepdims=True), axis=0, keepdims=True)


def _lse_sum(logits, axis):
    """Sum over the batch of log-sum-exp taken along `axis`. Returns (1, 1)."""
    m = jnp.max(logits, axis=axis, keepdims=True)
    lse = jnp.log(jnp.sum(jnp.exp(logits - m), axis=axis, keepdims=True)) + m
    return _sum_all(lse)


# ------------------------------- kernel ----------------------------------

def _adv_loss_kernel(img_ref, idtext_ref, idlogits_ref, idemb_ref,
                     cloth_ref, clothtext_ref, pids_ref,
                     w_id_hbm, b_id_ref, w_cloth_hbm, b_cloth_ref,
                     out_ref,
                     w_id_buf, w_cloth_buf, dma_sem):
    inv_t = 1.0 / TEMPERATURE

    # ---- start projector-weight DMA immediately (HBM -> VMEM, bf16) ----
    cp_id = pltpu.make_async_copy(w_id_hbm, w_id_buf, dma_sem.at[0])
    cp_cloth = pltpu.make_async_copy(w_cloth_hbm, w_cloth_buf, dma_sem.at[1])
    cp_id.start()
    cp_cloth.start()

    # ================= weight-independent work (overlaps the DMA) =================

    img_n = _normalize(img_ref[...])                                  # (B, 256)
    txt_n = _normalize(idtext_ref[...])                               # (B, 256)
    ctxt_n = _normalize(clothtext_ref[...])                           # (B, 256)
    B = img_n.shape[0]

    # ---- InfoNCE (i2t + t2i) with labels = arange ----
    logits = _matmul_bt(img_n, txt_n) * inv_t                         # (B, B)
    diag_info = _sum_all(jnp.sum(img_n * txt_n, axis=-1, keepdims=True)) * inv_t
    info_nce = ((_lse_sum(logits, axis=-1) - diag_info)
                + (_lse_sum(logits, axis=0) - diag_info)) * (0.5 / B)

    # ---- ID classification: CE(id_logits, pids) ----
    # TODO(synk): for realistic NUM_CLS (thousands), tile the class axis with a grid
    # reduction axis + online-LSE accumulator instead of a single (B, C) block.
    id_logits = idlogits_ref[...]                                     # (B, C)
    pids2d = pids_ref[...]                                            # (B, 1) int32
    m = jnp.max(id_logits, axis=-1, keepdims=True)
    lse = jnp.log(jnp.sum(jnp.exp(id_logits - m), axis=-1, keepdims=True)) + m
    ci = jax.lax.broadcasted_iota(jnp.int32, id_logits.shape, 1)
    tgt = jnp.sum(jnp.where(ci == pids2d, id_logits, 0.0), axis=-1, keepdims=True)
    cls_loss = _sum_all(lse - tgt) / B

    # Activations for the projections, cast to bf16 (tiny; native MXU input dtype).
    idemb_bf = idemb_ref[...].astype(jnp.bfloat16)                    # (B, 768)
    cloth_bf = cloth_ref[...].astype(jnp.bfloat16)                    # (B, 768)

    # ================= weight-dependent work =================

    cp_id.wait()
    cp_cloth.wait()

    # bf16 x bf16 MXU matmuls, f32 accumulate; bias add / normalize in f32.
    id_proj = _matmul_bt(idemb_bf, w_id_buf[...]) + b_id_ref[...]     # (B, 256)
    cloth_proj = _matmul_bt(cloth_bf, w_cloth_buf[...]) + b_cloth_ref[...]
    idp_n = _normalize(id_proj)
    clothp_n = _normalize(cloth_proj)

    bio_logits = _matmul_bt(idp_n, txt_n) * inv_t                     # (B, B)
    cloth_logits = _matmul_bt(clothp_n, ctxt_n) * inv_t               # (B, B)
    diag_bio = _sum_all(jnp.sum(idp_n * txt_n, axis=-1, keepdims=True)) * inv_t
    diag_cloth = _sum_all(jnp.sum(clothp_n * ctxt_n, axis=-1, keepdims=True)) * inv_t
    bio_loss = (_lse_sum(bio_logits, axis=-1) - diag_bio) / B
    cloth_loss = (_lse_sum(cloth_logits, axis=-1) - diag_cloth) / B

    # ---- single lane-packed output: [info, cls, bio, cloth, 0, 0, 0, 0] ----
    lane = jax.lax.broadcasted_iota(jnp.int32, (1, 8), 1)
    out_ref[...] = (jnp.where(lane == 0, info_nce, 0.0)
                    + jnp.where(lane == 1, cls_loss, 0.0)
                    + jnp.where(lane == 2, bio_loss, 0.0)
                    + jnp.where(lane == 3, cloth_loss, 0.0))


# ------------------------------ wrapper -----------------------------------

def _full_spec(shape):
    zeros = (0,) * len(shape)
    return pl.BlockSpec(shape, lambda i, _z=zeros: _z)


@jax.jit
def advanced_loss(image_embeds, id_text_embeds, fused_embeds, id_logits,
                  id_embeds, cloth_embeds, cloth_text_embeds, pids,
                  w_id, b_id, w_cloth, b_cloth):
    # fused_embeds is accepted for signature fidelity but (like the PyTorch forward)
    # is never used.
    del fused_embeds
    B = image_embeds.shape[0]

    def as_f32(x):
        return x if x.dtype == jnp.float32 else x.astype(jnp.float32)

    pids2d = pids.astype(jnp.int32).reshape(B, 1)
    b_id_2d = as_f32(b_id).reshape(1, -1)
    b_cloth_2d = as_f32(b_cloth).reshape(1, -1)

    # Weights stay in their native [256, 768] layout and native (bf16) dtype; they go
    # to the kernel as raw HBM refs and are DMA'd manually (overlapped with compute).
    inputs = (as_f32(image_embeds), as_f32(id_text_embeds), as_f32(id_logits),
              as_f32(id_embeds), as_f32(cloth_embeds), as_f32(cloth_text_embeds),
              pids2d, w_id, b_id_2d, w_cloth, b_cloth_2d)

    in_specs = [
        _full_spec(inputs[0].shape),          # image_embeds
        _full_spec(inputs[1].shape),          # id_text_embeds
        _full_spec(inputs[2].shape),          # id_logits
        _full_spec(inputs[3].shape),          # id_embeds
        _full_spec(inputs[4].shape),          # cloth_embeds
        _full_spec(inputs[5].shape),          # cloth_text_embeds
        _full_spec(inputs[6].shape),          # pids
        pl.BlockSpec(memory_space=pl.ANY),    # w_id  (raw HBM, manual DMA)
        _full_spec(inputs[8].shape),          # b_id
        pl.BlockSpec(memory_space=pl.ANY),    # w_cloth (raw HBM, manual DMA)
        _full_spec(inputs[10].shape),         # b_cloth
    ]

    # Explicit VMEM budget: inputs (~150 KiB double-buffered) + 2 x (256,768) bf16
    # weight scratch (~768 KiB) + intermediates, with generous headroom.
    vmem_limit = 16 * 1024 * 1024

    # TODO(synk): on v7x, add a leading "parallel" grid axis (batch split across the
    # two TensorCores, partial (1,8) outputs reduced in the wrapper); unnecessary at
    # these toy sizes.
    losses = pl.pallas_call(
        _adv_loss_kernel,
        out_shape=jax.ShapeDtypeStruct((1, 8), jnp.float32),
        grid_spec=pltpu.PrefetchScalarGridSpec(
            num_scalar_prefetch=0,
            grid=(1,),
            in_specs=in_specs,
            out_specs=_full_spec((1, 8)),
            scratch_shapes=[
                pltpu.VMEM(w_id.shape, jnp.bfloat16),
                pltpu.VMEM(w_cloth.shape, jnp.bfloat16),
                pltpu.SemaphoreType.DMA((2,)),
            ],
        ),
        compiler_params=pltpu.CompilerParams(
            dimension_semantics=("arbitrary",),
            vmem_limit_bytes=vmem_limit),
    )(*inputs)

    info_nce = losses[0, 0]
    cls_l = losses[0, 1]
    bio_l = losses[0, 2]
    cloth_l = losses[0, 3]
    # The PyTorch module's cloth_adversarial_loss literally returns -CE in forward.
    cloth_adv_l = -cloth_l
    total = (WEIGHTS['info_nce'] * info_nce
             + WEIGHTS['cls'] * cls_l
             + WEIGHTS['bio'] * bio_l
             + WEIGHTS['cloth'] * cloth_l
             + WEIGHTS['cloth_adv'] * cloth_adv_l)
    return {'info_nce': info_nce, 'cls': cls_l, 'bio': bio_l,
            'cloth': cloth_l, 'cloth_adv': cloth_adv_l, 'total': total}


# --------------------------- pure-JAX reference ---------------------------

def _ref_normalize(x):
    return x / jnp.maximum(jnp.linalg.norm(x, axis=-1, keepdims=True), EPS)


def _ref_ce(logits, labels):
    lse = jax.scipy.special.logsumexp(logits, axis=-1)
    return jnp.mean(lse - logits[jnp.arange(logits.shape[0]), labels])


def reference_loss(image_embeds, id_text_embeds, fused_embeds, id_logits,
                   id_embeds, cloth_embeds, cloth_text_embeds, pids,
                   w_id, b_id, w_cloth, b_cloth):
    del fused_embeds
    B = image_embeds.shape[0]
    ar = jnp.arange(B)
    img_n = _ref_normalize(image_embeds)
    txt_n = _ref_normalize(id_text_embeds)
    logits = img_n @ txt_n.T / TEMPERATURE
    info_nce = 0.5 * (_ref_ce(logits, ar) + _ref_ce(logits.T, ar))
    cls = _ref_ce(id_logits, pids)
    # Same mixed-precision recipe as the kernel: bf16 activations x bf16 weights,
    # f32 accumulation, f32 bias/normalize.
    id_proj = jnp.dot(id_embeds.astype(jnp.bfloat16), w_id.T,
                      preferred_element_type=jnp.float32) + b_id
    bio = _ref_ce(_ref_normalize(id_proj) @ txt_n.T / TEMPERATURE, ar)
    cloth_proj = jnp.dot(cloth_embeds.astype(jnp.bfloat16), w_cloth.T,
                         preferred_element_type=jnp.float32) + b_cloth
    ctxt_n = _ref_normalize(cloth_text_embeds)
    cloth = _ref_ce(_ref_normalize(cloth_proj) @ ctxt_n.T / TEMPERATURE, ar)
    cloth_adv = -cloth
    total = (WEIGHTS['info_nce'] * info_nce + WEIGHTS['cls'] * cls
             + WEIGHTS['bio'] * bio + WEIGHTS['cloth'] * cloth
             + WEIGHTS['cloth_adv'] * cloth_adv)
    return {'info_nce': info_nce, 'cls': cls, 'bio': bio,
            'cloth': cloth, 'cloth_adv': cloth_adv, 'total': total}


# ----------------------------------- main ----------------------------------

if __name__ == "__main__":
    B, FEAT, TEXT_W, NUM_CLS = 8, 256, 768, 64

    key = jax.random.PRNGKey(0)
    ks = jax.random.split(key, 12)
    image_embeds = jax.random.normal(ks[0], (B, FEAT), jnp.float32)
    id_text_embeds = jax.random.normal(ks[1], (B, FEAT), jnp.float32)
    fused_embeds = jax.random.normal(ks[2], (B, FEAT), jnp.float32)
    id_logits = jax.random.normal(ks[3], (B, NUM_CLS), jnp.float32)
    id_embeds = jax.random.normal(ks[4], (B, TEXT_W), jnp.float32)
    cloth_embeds = jax.random.normal(ks[5], (B, TEXT_W), jnp.float32)
    cloth_text_embeds = jax.random.normal(ks[6], (B, FEAT), jnp.float32)
    pids = jax.random.randint(ks[7], (B,), 0, NUM_CLS, jnp.int32)

    # nn.Linear(768, 256)-style init; parameters stored in bf16 (mixed-precision
    # storage) — both the kernel and the reference run the projections as bf16 x bf16
    # MXU matmuls with f32 accumulation.
    bound = 1.0 / jnp.sqrt(jnp.float32(TEXT_W))
    w_id = jax.random.uniform(ks[8], (FEAT, TEXT_W), jnp.float32,
                              -bound, bound).astype(jnp.bfloat16)
    b_id = jax.random.uniform(ks[9], (FEAT,), jnp.float32, -bound, bound)
    w_cloth = jax.random.uniform(ks[10], (FEAT, TEXT_W), jnp.float32,
                                 -bound, bound).astype(jnp.bfloat16)
    b_cloth = jax.random.uniform(ks[11], (FEAT,), jnp.float32, -bound, bound)

    args = (image_embeds, id_text_embeds, fused_embeds, id_logits, id_embeds,
            cloth_embeds, cloth_text_embeds, pids, w_id, b_id, w_cloth, b_cloth)

    out = advanced_loss(*args)
    out = jax.tree_util.tree_map(jax.block_until_ready, out)

    ref = reference_loss(*args)
    for k in ('info_nce', 'cls', 'bio', 'cloth', 'cloth_adv', 'total'):
        assert jnp.allclose(out[k], ref[k], rtol=1e-3, atol=1e-3), (
            k, float(out[k]), float(ref[k]))

    print("KERNEL_OK")
</pallas_src>

<mosaic_0001>
module attributes {stable_mosaic.version = 11 : i64} {
  func.func @_adv_loss_kernel(%arg0: i32, %arg1: memref<8x256xf32, #tpu.memory_space<vmem>>, %arg2: memref<8x256xf32, #tpu.memory_space<vmem>>, %arg3: memref<8x64xf32, #tpu.memory_space<vmem>>, %arg4: memref<8x768xf32, #tpu.memory_space<vmem>>, %arg5: memref<8x768xf32, #tpu.memory_space<vmem>>, %arg6: memref<8x256xf32, #tpu.memory_space<vmem>>, %arg7: memref<8x1xi32, #tpu.memory_space<vmem>>, %arg8: memref<256x768xbf16, #tpu.memory_space<any>>, %arg9: memref<1x256xf32, #tpu.memory_space<vmem>>, %arg10: memref<256x768xbf16, #tpu.memory_space<any>>, %arg11: memref<1x256xf32, #tpu.memory_space<vmem>>, %arg12: memref<1x8xf32, #tpu.memory_space<vmem>>, %arg13: memref<256x768xbf16, #tpu.memory_space<vmem>>, %arg14: memref<256x768xbf16, #tpu.memory_space<vmem>>, %arg15: memref<2x!tpu.dma_semaphore, #tpu.memory_space<semaphore_mem>>) attributes {dimension_semantics = [#tpu.dimension_semantics<arbitrary>], iteration_bounds = array<i64: 1>, scalar_prefetch = 0 : i64, scratch_operands = 3 : i64, tpu.core_type = #tpu.core_type<tc>, window_params = [{pipeline_mode = #tpu.pipeline_mode<synchronous>, transform_indices = @transform_0, window_bounds = array<i64: 8, 256>}, {pipeline_mode = #tpu.pipeline_mode<synchronous>, transform_indices = @transform_1, window_bounds = array<i64: 8, 256>}, {pipeline_mode = #tpu.pipeline_mode<synchronous>, transform_indices = @transform_2, window_bounds = array<i64: 8, 64>}, {pipeline_mode = #tpu.pipeline_mode<synchronous>, transform_indices = @transform_3, window_bounds = array<i64: 8, 768>}, {pipeline_mode = #tpu.pipeline_mode<synchronous>, transform_indices = @transform_4, window_bounds = array<i64: 8, 768>}, {pipeline_mode = #tpu.pipeline_mode<synchronous>, transform_indices = @transform_5, window_bounds = array<i64: 8, 256>}, {pipeline_mode = #tpu.pipeline_mode<synchronous>, transform_indices = @transform_6, window_bounds = array<i64: 8, 1>}, {}, {pipeline_mode = #tpu.pipeline_mode<synchronous>, transform_indices = @transform_8, window_bounds = array<i64: 1, 256>}, {}, {pipeline_mode = #tpu.pipeline_mode<synchronous>, transform_indices = @transform_10, window_bounds = array<i64: 1, 256>}, {pipeline_mode = #tpu.pipeline_mode<synchronous>, transform_indices = @transform_11, window_bounds = array<i64: 1, 8>}]} {
    %c0_i32 = arith.constant 0 : i32
    %0 = tpu.memref_slice %arg15[%c0_i32] : memref<2x!tpu.dma_semaphore, #tpu.memory_space<semaphore_mem>> -> memref<1x!tpu.dma_semaphore, #tpu.memory_space<semaphore_mem>>
    %1 = tpu.memref_squeeze %0 : memref<1x!tpu.dma_semaphore, #tpu.memory_space<semaphore_mem>> -> memref<!tpu.dma_semaphore, #tpu.memory_space<semaphore_mem>>
    tpu.enqueue_dma source(%arg8 : memref<256x768xbf16, #tpu.memory_space<any>>) target(%arg13 : memref<256x768xbf16, #tpu.memory_space<vmem>>) target_semaphore(%1 : memref<!tpu.dma_semaphore, #tpu.memory_space<semaphore_mem>>)
    %c1_i32 = arith.constant 1 : i32
    %2 = tpu.memref_slice %arg15[%c1_i32] : memref<2x!tpu.dma_semaphore, #tpu.memory_space<semaphore_mem>> -> memref<1x!tpu.dma_semaphore, #tpu.memory_space<semaphore_mem>>
    %3 = tpu.memref_squeeze %2 : memref<1x!tpu.dma_semaphore, #tpu.memory_space<semaphore_mem>> -> memref<!tpu.dma_semaphore, #tpu.memory_space<semaphore_mem>>
    tpu.enqueue_dma source(%arg10 : memref<256x768xbf16, #tpu.memory_space<any>>) target(%arg14 : memref<256x768xbf16, #tpu.memory_space<vmem>>) target_semaphore(%3 : memref<!tpu.dma_semaphore, #tpu.memory_space<semaphore_mem>>)
    %c0 = arith.constant 0 : index
    %c0_0 = arith.constant 0 : index
    %4 = vector.load %arg1[%c0, %c0_0] : memref<8x256xf32, #tpu.memory_space<vmem>>, vector<8x256xf32>
    %5 = arith.mulf %4, %4 : vector<8x256xf32>
    %cst = arith.constant dense<0.000000e+00> : vector<8xf32>
    %6 = vector.multi_reduction <add>, %5, %cst [1] : vector<8x256xf32> to vector<8xf32>
    %7 = vector.shape_cast %6 : vector<8xf32> to vector<8x1xf32>
    %cst_1 = arith.constant 1.000000e-24 : f32
    %8 = vector.broadcast %cst_1 : f32 to vector<8x1xf32>
    %9 = arith.maximumf %7, %8 : vector<8x1xf32>
    %10 = math.rsqrt %9 : vector<8x1xf32>
    %11 = vector.broadcast %10 : vector<8x1xf32> to vector<8x256xf32>
    %12 = arith.mulf %4, %11 : vector<8x256xf32>
    %c0_2 = arith.constant 0 : index
    %c0_3 = arith.constant 0 : index
    %13 = vector.load %arg2[%c0_2, %c0_3] : memref<8x256xf32, #tpu.memory_space<vmem>>, vector<8x256xf32>
    %14 = arith.mulf %13, %13 : vector<8x256xf32>
    %cst_4 = arith.constant dense<0.000000e+00> : vector<8xf32>
    %15 = vector.multi_reduction <add>, %14, %cst_4 [1] : vector<8x256xf32> to vector<8xf32>
    %16 = vector.shape_cast %15 : vector<8xf32> to vector<8x1xf32>
    %cst_5 = arith.constant 1.000000e-24 : f32
    %17 = vector.broadcast %cst_5 : f32 to vector<8x1xf32>
    %18 = arith.maximumf %16, %17 : vector<8x1xf32>
    %19 = math.rsqrt %18 : vector<8x1xf32>
    %20 = vector.broadcast %19 : vector<8x1xf32> to vector<8x256xf32>
    %21 = arith.mulf %13, %20 : vector<8x256xf32>
    %c0_6 = arith.constant 0 : index
    %c0_7 = arith.constant 0 : index
    %22 = vector.load %arg6[%c0_6, %c0_7] : memref<8x256xf32, #tpu.memory_space<vmem>>, vector<8x256xf32>
    %23 = arith.mulf %22, %22 : vector<8x256xf32>
    %cst_8 = arith.constant dense<0.000000e+00> : vector<8xf32>
    %24 = vector.multi_reduction <add>, %23, %cst_8 [1] : vector<8x256xf32> to vector<8xf32>
    %25 = vector.shape_cast %24 : vector<8xf32> to vector<8x1xf32>
    %cst_9 = arith.constant 1.000000e-24 : f32
    %26 = vector.broadcast %cst_9 : f32 to vector<8x1xf32>
    %27 = arith.maximumf %25, %26 : vector<8x1xf32>
    %28 = math.rsqrt %27 : vector<8x1xf32>
    %29 = vector.broadcast %28 : vector<8x1xf32> to vector<8x256xf32>
    %30 = arith.mulf %22, %29 : vector<8x256xf32>
    %cst_10 = arith.constant dense<0.000000e+00> : vector<8x8xf32>
    %31 = tpu.matmul %12, %21, %cst_10 {dimension_numbers = #tpu.dot_dimension_numbers<[1], [1], [0], [0], [0, 0, 1, 0], [], []>} : vector<8x256xf32>, vector<8x256xf32>, vector<8x8xf32> -> vector<8x8xf32>
    %cst_11 = arith.constant 14.2857141 : f32
    %32 = vector.broadcast %cst_11 : f32 to vector<8x8xf32>
    %33 = arith.mulf %31, %32 : vector<8x8xf32>
    %34 = arith.mulf %12, %21 : vector<8x256xf32>
    %cst_12 = arith.constant dense<0.000000e+00> : vector<8xf32>
    %35 = vector.multi_reduction <add>, %34, %cst_12 [1] : vector<8x256xf32> to vector<8xf32>
    %36 = vector.shape_cast %35 : vector<8xf32> to vector<8x1xf32>
    %cst_13 = arith.constant dense<0.000000e+00> : vector<8xf32>
    %37 = vector.multi_reduction <add>, %36, %cst_13 [1] : vector<8x1xf32> to vector<8xf32>
    %38 = vector.shape_cast %37 : vector<8xf32> to vector<8x1xf32>
    %cst_14 = arith.constant dense<0.000000e+00> : vector<1xf32>
    %39 = vector.multi_reduction <add>, %38, %cst_14 [0] : vector<8x1xf32> to vector<1xf32>
    %40 = vector.shape_cast %39 : vector<1xf32> to vector<1x1xf32>
    %cst_15 = arith.constant 14.2857141 : f32
    %41 = vector.broadcast %cst_15 : f32 to vector<1x1xf32>
    %42 = arith.mulf %40, %41 : vector<1x1xf32>
    %cst_16 = arith.constant dense<0xFF800000> : vector<8xf32>
    %43 = vector.multi_reduction <maximumf>, %33, %cst_16 [1] : vector<8x8xf32> to vector<8xf32>
    %44 = vector.shape_cast %43 : vector<8xf32> to vector<8x1xf32>
    %45 = vector.broadcast %44 : vector<8x1xf32> to vector<8x8xf32>
    %46 = arith.subf %33, %45 : vector<8x8xf32>
    %47 = math.exp %46 : vector<8x8xf32>
    %cst_17 = arith.constant dense<0.000000e+00> : vector<8xf32>
    %48 = vector.multi_reduction <add>, %47, %cst_17 [1] : vector<8x8xf32> to vector<8xf32>
    %49 = vector.shape_cast %48 : vector<8xf32> to vector<8x1xf32>
    %50 = math.log %49 : vector<8x1xf32>
    %51 = arith.addf %50, %44 : vector<8x1xf32>
    %cst_18 = arith.constant dense<0.000000e+00> : vector<8xf32>
    %52 = vector.multi_reduction <add>, %51, %cst_18 [1] : vector<8x1xf32> to vector<8xf32>
    %53 = vector.shape_cast %52 : vector<8xf32> to vector<8x1xf32>
    %cst_19 = arith.constant dense<0.000000e+00> : vector<1xf32>
    %54 = vector.multi_reduction <add>, %53, %cst_19 [0] : vector<8x1xf32> to vector<1xf32>
    %55 = vector.shape_cast %54 : vector<1xf32> to vector<1x1xf32>
    %56 = arith.subf %55, %42 : vector<1x1xf32>
    %cst_20 = arith.constant dense<0xFF800000> : vector<8xf32>
    %57 = vector.multi_reduction <maximumf>, %33, %cst_20 [0] : vector<8x8xf32> to vector<8xf32>
    %58 = vector.shape_cast %57 : vector<8xf32> to vector<1x8xf32>
    %59 = vector.broadcast %58 : vector<1x8xf32> to vector<8x8xf32>
    %60 = arith.subf %33, %59 : vector<8x8xf32>
    %61 = math.exp %60 : vector<8x8xf32>
    %cst_21 = arith.constant dense<0.000000e+00> : vector<8xf32>
    %62 = vector.multi_reduction <add>, %61, %cst_21 [0] : vector<8x8xf32> to vector<8xf32>
    %63 = vector.shape_cast %62 : vector<8xf32> to vector<1x8xf32>
    %64 = math.log %63 : vector<1x8xf32>
    %65 = arith.addf %64, %58 : vector<1x8xf32>
    %cst_22 = arith.constant dense<0.000000e+00> : vector<1xf32>
    %66 = vector.multi_reduction <add>, %65, %cst_22 [1] : vector<1x8xf32> to vector<1xf32>
    %67 = vector.shape_cast %66 : vector<1xf32> to vector<1x1xf32>
    %cst_23 = arith.constant dense<0.000000e+00> : vector<1xf32>
    %68 = vector.multi_reduction <add>, %67, %cst_23 [0] : vector<1x1xf32> to vector<1xf32>
    %69 = vector.shape_cast %68 : vector<1xf32> to vector<1x1xf32>
    %70 = arith.subf %69, %42 : vector<1x1xf32>
    %71 = arith.addf %56, %70 : vector<1x1xf32>
    %cst_24 = arith.constant 6.250000e-02 : f32
    %72 = vector.broadcast %cst_24 : f32 to vector<1x1xf32>
    %73 = arith.mulf %71, %72 : vector<1x1xf32>
    %c0_25 = arith.constant 0 : index
    %c0_26 = arith.constant 0 : index
    %74 = vector.load %arg3[%c0_25, %c0_26] : memref<8x64xf32, #tpu.memory_space<vmem>>, vector<8x64xf32>
    %c0_27 = arith.constant 0 : index
    %c0_28 = arith.constant 0 : index
    %75 = vector.load %arg7[%c0_27, %c0_28] : memref<8x1xi32, #tpu.memory_space<vmem>>, vector<8x1xi32>
    %cst_29 = arith.constant dense<0xFF800000> : vector<8xf32>
    %76 = vector.multi_reduction <maximumf>, %74, %cst_29 [1] : vector<8x64xf32> to vector<8xf32>
    %77 = vector.shape_cast %76 : vector<8xf32> to vector<8x1xf32>
    %78 = vector.broadcast %77 : vector<8x1xf32> to vector<8x64xf32>
    %79 = arith.subf %74, %78 : vector<8x64xf32>
    %80 = math.exp %79 : vector<8x64xf32>
    %cst_30 = arith.constant dense<0.000000e+00> : vector<8xf32>
    %81 = vector.multi_reduction <add>, %80, %cst_30 [1] : vector<8x64xf32> to vector<8xf32>
    %82 = vector.shape_cast %81 : vector<8xf32> to vector<8x1xf32>
    %83 = math.log %82 : vector<8x1xf32>
    %84 = arith.addf %83, %77 : vector<8x1xf32>
    %85 = tpu.iota {dimensions = array<i32: 1>} : vector<8x64xi32>
    %86 = vector.broadcast %75 : vector<8x1xi32> to vector<8x64xi32>
    %87 = arith.cmpi eq, %85, %86 : vector<8x64xi32>
    %cst_31 = arith.constant 0.000000e+00 : f32
    %88 = vector.broadcast %cst_31 : f32 to vector<8x64xf32>
    %89 = arith.select %87, %74, %88 : vector<8x64xi1>, vector<8x64xf32>
    %cst_32 = arith.constant dense<0.000000e+00> : vector<8xf32>
    %90 = vector.multi_reduction <add>, %89, %cst_32 [1] : vector<8x64xf32> to vector<8xf32>
    %91 = vector.shape_cast %90 : vector<8xf32> to vector<8x1xf32>
    %92 = arith.subf %84, %91 : vector<8x1xf32>
    %cst_33 = arith.constant dense<0.000000e+00> : vector<8xf32>
    %93 = vector.multi_reduction <add>, %92, %cst_33 [1] : vector<8x1xf32> to vector<8xf32>
    %94 = vector.shape_cast %93 : vector<8xf32> to vector<8x1xf32>
    %cst_34 = arith.constant dense<0.000000e+00> : vector<1xf32>
    %95 = vector.multi_reduction <add>, %94, %cst_34 [0] : vector<8x1xf32> to vector<1xf32>
    %96 = vector.shape_cast %95 : vector<1xf32> to vector<1x1xf32>
    %cst_35 = arith.constant 8.000000e+00 : f32
    %97 = vector.broadcast %cst_35 : f32 to vector<1x1xf32>
    %98 = arith.divf %96, %97 : vector<1x1xf32>
    %c0_36 = arith.constant 0 : index
    %c0_37 = arith.constant 0 : index
    %99 = vector.load %arg4[%c0_36, %c0_37] : memref<8x768xf32, #tpu.memory_space<vmem>>, vector<8x768xf32>
    %100 = arith.truncf %99 : vector<8x768xf32> to vector<8x768xbf16>
    %c0_38 = arith.constant 0 : index
    %c0_39 = arith.constant 0 : index
    %101 = vector.load %arg5[%c0_38, %c0_39] : memref<8x768xf32, #tpu.memory_space<vmem>>, vector<8x768xf32>
    %102 = arith.truncf %101 : vector<8x768xf32> to vector<8x768xbf16>
    %c0_i32_40 = arith.constant 0 : i32
    %103 = tpu.memref_slice %arg15[%c0_i32_40] : memref<2x!tpu.dma_semaphore, #tpu.memory_space<semaphore_mem>> -> memref<1x!tpu.dma_semaphore, #tpu.memory_space<semaphore_mem>>
    %104 = tpu.memref_squeeze %103 : memref<1x!tpu.dma_semaphore, #tpu.memory_space<semaphore_mem>> -> memref<!tpu.dma_semaphore, #tpu.memory_space<semaphore_mem>>
    tpu.wait_dma2 semaphore(%104 : memref<!tpu.dma_semaphore, #tpu.memory_space<semaphore_mem>>) src(%arg8 : memref<256x768xbf16, #tpu.memory_space<any>>) dst(%arg13 : memref<256x768xbf16, #tpu.memory_space<vmem>>)
    %c1_i32_41 = arith.constant 1 : i32
    %105 = tpu.memref_slice %arg15[%c1_i32_41] : memref<2x!tpu.dma_semaphore, #tpu.memory_space<semaphore_mem>> -> memref<1x!tpu.dma_semaphore, #tpu.memory_space<semaphore_mem>>
    %106 = tpu.memref_squeeze %105 : memref<1x!tpu.dma_semaphore, #tpu.memory_space<semaphore_mem>> -> memref<!tpu.dma_semaphore, #tpu.memory_space<semaphore_mem>>
    tpu.wait_dma2 semaphore(%106 : memref<!tpu.dma_semaphore, #tpu.memory_space<semaphore_mem>>) src(%arg10 : memref<256x768xbf16, #tpu.memory_space<any>>) dst(%arg14 : memref<256x768xbf16, #tpu.memory_space<vmem>>)
    %c0_42 = arith.constant 0 : index
    %c0_43 = arith.constant 0 : index
    %107 = vector.load %arg13[%c0_42, %c0_43] : memref<256x768xbf16, #tpu.memory_space<vmem>>, vector<256x768xbf16>
    %cst_44 = arith.constant dense<0.000000e+00> : vector<8x256xf32>
    %108 = tpu.matmul %100, %107, %cst_44 {dimension_numbers = #tpu.dot_dimension_numbers<[1], [1], [0], [0], [0, 0, 1, 0], [], []>} : vector<8x768xbf16>, vector<256x768xbf16>, vector<8x256xf32> -> vector<8x256xf32>
    %c0_45 = arith.constant 0 : index
    %c0_46 = arith.constant 0 : index
    %109 = vector.load %arg9[%c0_45, %c0_46] : memref<1x256xf32, #tpu.memory_space<vmem>>, vector<1x256xf32>
    %110 = vector.broadcast %109 : vector<1x256xf32> to vector<8x256xf32>
    %111 = arith.addf %108, %110 : vector<8x256xf32>
    %c0_47 = arith.constant 0 : index
    %c0_48 = arith.constant 0 : index
    %112 = vector.load %arg14[%c0_47, %c0_48] : memref<256x768xbf16, #tpu.memory_space<vmem>>, vector<256x768xbf16>
    %cst_49 = arith.constant dense<0.000000e+00> : vector<8x256xf32>
    %113 = tpu.matmul %102, %112, %cst_49 {dimension_numbers = #tpu.dot_dimension_numbers<[1], [1], [0], [0], [0, 0, 1, 0], [], []>} : vector<8x768xbf16>, vector<256x768xbf16>, vector<8x256xf32> -> vector<8x256xf32>
    %c0_50 = arith.constant 0 : index
    %c0_51 = arith.constant 0 : index
    %114 = vector.load %arg11[%c0_50, %c0_51] : memref<1x256xf32, #tpu.memory_space<vmem>>, vector<1x256xf32>
    %115 = vector.broadcast %114 : vector<1x256xf32> to vector<8x256xf32>
    %116 = arith.addf %113, %115 : vector<8x256xf32>
    %117 = arith.mulf %111, %111 : vector<8x256xf32>
    %cst_52 = arith.constant dense<0.000000e+00> : vector<8xf32>
    %118 = vector.multi_reduction <add>, %117, %cst_52 [1] : vector<8x256xf32> to vector<8xf32>
    %119 = vector.shape_cast %118 : vector<8xf32> to vector<8x1xf32>
    %cst_53 = arith.constant 1.000000e-24 : f32
    %120 = vector.broadcast %cst_53 : f32 to vector<8x1xf32>
    %121 = arith.maximumf %119, %120 : vector<8x1xf32>
    %122 = math.rsqrt %121 : vector<8x1xf32>
    %123 = vector.broadcast %122 : vector<8x1xf32> to vector<8x256xf32>
    %124 = arith.mulf %111, %123 : vector<8x256xf32>
    %125 = arith.mulf %116, %116 : vector<8x256xf32>
    %cst_54 = arith.constant dense<0.000000e+00> : vector<8xf32>
    %126 = vector.multi_reduction <add>, %125, %cst_54 [1] : vector<8x256xf32> to vector<8xf32>
    %127 = vector.shape_cast %126 : vector<8xf32> to vector<8x1xf32>
    %cst_55 = arith.constant 1.000000e-24 : f32
    %128 = vector.broadcast %cst_55 : f32 to vector<8x1xf32>
    %129 = arith.maximumf %127, %128 : vector<8x1xf32>
    %130 = math.rsqrt %129 : vector<8x1xf32>
    %131 = vector.broadcast %130 : vector<8x1xf32> to vector<8x256xf32>
    %132 = arith.mulf %116, %131 : vector<8x256xf32>
    %cst_56 = arith.constant dense<0.000000e+00> : vector<8x8xf32>
    %133 = tpu.matmul %124, %21, %cst_56 {dimension_numbers = #tpu.dot_dimension_numbers<[1], [1], [0], [0], [0, 0, 1, 0], [], []>} : vector<8x256xf32>, vector<8x256xf32>, vector<8x8xf32> -> vector<8x8xf32>
    %cst_57 = arith.constant 14.2857141 : f32
    %134 = vector.broadcast %cst_57 : f32 to vector<8x8xf32>
    %135 = arith.mulf %133, %134 : vector<8x8xf32>
    %cst_58 = arith.constant dense<0.000000e+00> : vector<8x8xf32>
    %136 = tpu.matmul %132, %30, %cst_58 {dimension_numbers = #tpu.dot_dimension_numbers<[1], [1], [0], [0], [0, 0, 1, 0], [], []>} : vector<8x256xf32>, vector<8x256xf32>, vector<8x8xf32> -> vector<8x8xf32>
    %cst_59 = arith.constant 14.2857141 : f32
    %137 = vector.broadcast %cst_59 : f32 to vector<8x8xf32>
    %138 = arith.mulf %136, %137 : vector<8x8xf32>
    %139 = arith.mulf %124, %21 : vector<8x256xf32>
    %cst_60 = arith.constant dense<0.000000e+00> : vector<8xf32>
    %140 = vector.multi_reduction <add>, %139, %cst_60 [1] : vector<8x256xf32> to vector<8xf32>
    %141 = vector.shape_cast %140 : vector<8xf32> to vector<8x1xf32>
    %cst_61 = arith.constant dense<0.000000e+00> : vector<8xf32>
    %142 = vector.multi_reduction <add>, %141, %cst_61 [1] : vector<8x1xf32> to vector<8xf32>
    %143 = vector.shape_cast %142 : vector<8xf32> to vector<8x1xf32>
    %cst_62 = arith.constant dense<0.000000e+00> : vector<1xf32>
    %144 = vector.multi_reduction <add>, %143, %cst_62 [0] : vector<8x1xf32> to vector<1xf32>
    %145 = vector.shape_cast %144 : vector<1xf32> to vector<1x1xf32>
    %cst_63 = arith.constant 14.2857141 : f32
    %146 = vector.broadcast %cst_63 : f32 to vector<1x1xf32>
    %147 = arith.mulf %145, %146 : vector<1x1xf32>
    %148 = arith.mulf %132, %30 : vector<8x256xf32>
    %cst_64 = arith.constant dense<0.000000e+00> : vector<8xf32>
    %149 = vector.multi_reduction <add>, %148, %cst_64 [1] : vector<8x256xf32> to vector<8xf32>
    %150 = vector.shape_cast %149 : vector<8xf32> to vector<8x1xf32>
    %cst_65 = arith.constant dense<0.000000e+00> : vector<8xf32>
    %151 = vector.multi_reduction <add>, %150, %cst_65 [1] : vector<8x1xf32> to vector<8xf32>
    %152 = vector.shape_cast %151 : vector<8xf32> to vector<8x1xf32>
    %cst_66 = arith.constant dense<0.000000e+00> : vector<1xf32>
    %153 = vector.multi_reduction <add>, %152, %cst_66 [0] : vector<8x1xf32> to vector<1xf32>
    %154 = vector.shape_cast %153 : vector<1xf32> to vector<1x1xf32>
    %cst_67 = arith.constant 14.2857141 : f32
    %155 = vector.broadcast %cst_67 : f32 to vector<1x1xf32>
    %156 = arith.mulf %154, %155 : vector<1x1xf32>
    %cst_68 = arith.constant dense<0xFF800000> : vector<8xf32>
    %157 = vector.multi_reduction <maximumf>, %135, %cst_68 [1] : vector<8x8xf32> to vector<8xf32>
    %158 = vector.shape_cast %157 : vector<8xf32> to vector<8x1xf32>
    %159 = vector.broadcast %158 : vector<8x1xf32> to vector<8x8xf32>
    %160 = arith.subf %135, %159 : vector<8x8xf32>
    %161 = math.exp %160 : vector<8x8xf32>
    %cst_69 = arith.constant dense<0.000000e+00> : vector<8xf32>
    %162 = vector.multi_reduction <add>, %161, %cst_69 [1] : vector<8x8xf32> to vector<8xf32>
    %163 = vector.shape_cast %162 : vector<8xf32> to vector<8x1xf32>
    %164 = math.log %163 : vector<8x1xf32>
    %165 = arith.addf %164, %158 : vector<8x1xf32>
    %cst_70 = arith.constant dense<0.000000e+00> : vector<8xf32>
    %166 = vector.multi_reduction <add>, %165, %cst_70 [1] : vector<8x1xf32> to vector<8xf32>
    %167 = vector.shape_cast %166 : vector<8xf32> to vector<8x1xf32>
    %cst_71 = arith.constant dense<0.000000e+00> : vector<1xf32>
    %168 = vector.multi_reduction <add>, %167, %cst_71 [0] : vector<8x1xf32> to vector<1xf32>
    %169 = vector.shape_cast %168 : vector<1xf32> to vector<1x1xf32>
    %170 = arith.subf %169, %147 : vector<1x1xf32>
    %cst_72 = arith.constant 8.000000e+00 : f32
    %171 = vector.broadcast %cst_72 : f32 to vector<1x1xf32>
    %172 = arith.divf %170, %171 : vector<1x1xf32>
    %cst_73 = arith.constant dense<0xFF800000> : vector<8xf32>
    %173 = vector.multi_reduction <maximumf>, %138, %cst_73 [1] : vector<8x8xf32> to vector<8xf32>
    %174 = vector.shape_cast %173 : vector<8xf32> to vector<8x1xf32>
    %175 = vector.broadcast %174 : vector<8x1xf32> to vector<8x8xf32>
    %176 = arith.subf %138, %175 : vector<8x8xf32>
    %177 = math.exp %176 : vector<8x8xf32>
    %cst_74 = arith.constant dense<0.000000e+00> : vector<8xf32>
    %178 = vector.multi_reduction <add>, %177, %cst_74 [1] : vector<8x8xf32> to vector<8xf32>
    %179 = vector.shape_cast %178 : vector<8xf32> to vector<8x1xf32>
    %180 = math.log %179 : vector<8x1xf32>
    %181 = arith.addf %180, %174 : vector<8x1xf32>
    %cst_75 = arith.constant dense<0.000000e+00> : vector<8xf32>
    %182 = vector.multi_reduction <add>, %181, %cst_75 [1] : vector<8x1xf32> to vector<8xf32>
    %183 = vector.shape_cast %182 : vector<8xf32> to vector<8x1xf32>
    %cst_76 = arith.constant dense<0.000000e+00> : vector<1xf32>
    %184 = vector.multi_reduction <add>, %183, %cst_76 [0] : vector<8x1xf32> to vector<1xf32>
    %185 = vector.shape_cast %184 : vector<1xf32> to vector<1x1xf32>
    %186 = arith.subf %185, %156 : vector<1x1xf32>
    %cst_77 = arith.constant 8.000000e+00 : f32
    %187 = vector.broadcast %cst_77 : f32 to vector<1x1xf32>
    %188 = arith.divf %186, %187 : vector<1x1xf32>
    %189 = tpu.iota {dimensions = array<i32: 1>} : vector<1x8xi32>
    %c0_i32_78 = arith.constant 0 : i32
    %190 = vector.broadcast %c0_i32_78 : i32 to vector<1x8xi32>
    %191 = arith.cmpi eq, %189, %190 : vector<1x8xi32>
    %cst_79 = arith.constant 0.000000e+00 : f32
    %192 = vector.shape_cast %73 : vector<1x1xf32> to vector<1x1xf32>
    %193 = vector.broadcast %192 : vector<1x1xf32> to vector<1x8xf32>
    %194 = vector.broadcast %cst_79 : f32 to vector<1x8xf32>
    %195 = arith.select %191, %193, %194 : vector<1x8xi1>, vector<1x8xf32>
    %c1_i32_80 = arith.constant 1 : i32
    %196 = vector.broadcast %c1_i32_80 : i32 to vector<1x8xi32>
    %197 = arith.cmpi eq, %189, %196 : vector<1x8xi32>
    %cst_81 = arith.constant 0.000000e+00 : f32
    %198 = vector.shape_cast %98 : vector<1x1xf32> to vector<1x1xf32>
    %199 = vector.broadcast %198 : vector<1x1xf32> to vector<1x8xf32>
    %200 = vector.broadcast %cst_81 : f32 to vector<1x8xf32>
    %201 = arith.select %197, %199, %200 : vector<1x8xi1>, vector<1x8xf32>
    %202 = arith.addf %195, %201 : vector<1x8xf32>
    %c2_i32 = arith.constant 2 : i32
    %203 = vector.broadcast %c2_i32 : i32 to vector<1x8xi32>
    %204 = arith.cmpi eq, %189, %203 : vector<1x8xi32>
    %cst_82 = arith.constant 0.000000e+00 : f32
    %205 = vector.shape_cast %172 : vector<1x1xf32> to vector<1x1xf32>
    %206 = vector.broadcast %205 : vector<1x1xf32> to vector<1x8xf32>
    %207 = vector.broadcast %cst_82 : f32 to vector<1x8xf32>
    %208 = arith.select %204, %206, %207 : vector<1x8xi1>, vector<1x8xf32>
    %209 = arith.addf %202, %208 : vector<1x8xf32>
    %c3_i32 = arith.constant 3 : i32
    %210 = vector.broadcast %c3_i32 : i32 to vector<1x8xi32>
    %211 = arith.cmpi eq, %189, %210 : vector<1x8xi32>
    %cst_83 = arith.constant 0.000000e+00 : f32
    %212 = vector.shape_cast %188 : vector<1x1xf32> to vector<1x1xf32>
    %213 = vector.broadcast %212 : vector<1x1xf32> to vector<1x8xf32>
    %214 = vector.broadcast %cst_83 : f32 to vector<1x8xf32>
    %215 = arith.select %211, %213, %214 : vector<1x8xi1>, vector<1x8xf32>
    %216 = arith.addf %209, %215 : vector<1x8xf32>
    %c0_84 = arith.constant 0 : index
    %c0_85 = arith.constant 0 : index
    %217 = vector.load %arg12[%c0_84, %c0_85] : memref<1x8xf32, #tpu.memory_space<vmem>>, vector<1x8xf32>
    tpu.vector_store %arg12[%c0_84, %c0_85], %216 {strides = array<i32>} : memref<1x8xf32, #tpu.memory_space<vmem>>, vector<1x8xf32>,
    return
  }
  func.func @transform_0(%arg0: i32) -> (i32, i32) {
    %c0_i32 = arith.constant 0 : i32
    %c0_i32_0 = arith.constant 0 : i32
    %c0_i32_1 = arith.constant 0 : i32
    return %c0_i32, %c0_i32_0 : i32, i32
  }
  func.func @transform_1(%arg0: i32) -> (i32, i32) {
    %c0_i32 = arith.constant 0 : i32
    %c0_i32_0 = arith.constant 0 : i32
    %c0_i32_1 = arith.constant 0 : i32
    return %c0_i32, %c0_i32_0 : i32, i32
  }
  func.func @transform_2(%arg0: i32) -> (i32, i32) {
    %c0_i32 = arith.constant 0 : i32
    %c0_i32_0 = arith.constant 0 : i32
    %c0_i32_1 = arith.constant 0 : i32
    return %c0_i32, %c0_i32_0 : i32, i32
  }
  func.func @transform_3(%arg0: i32) -> (i32, i32) {
    %c0_i32 = arith.constant 0 : i32
    %c0_i32_0 = arith.constant 0 : i32
    %c0_i32_1 = arith.constant 0 : i32
    return %c0_i32, %c0_i32_0 : i32, i32
  }
  func.func @transform_4(%arg0: i32) -> (i32, i32) {
    %c0_i32 = arith.constant 0 : i32
    %c0_i32_0 = arith.constant 0 : i32
    %c0_i32_1 = arith.constant 0 : i32
    return %c0_i32, %c0_i32_0 : i32, i32
  }
  func.func @transform_5(%arg0: i32) -> (i32, i32) {
    %c0_i32 = arith.constant 0 : i32
    %c0_i32_0 = arith.constant 0 : i32
    %c0_i32_1 = arith.constant 0 : i32
    return %c0_i32, %c0_i32_0 : i32, i32
  }
  func.func @transform_6(%arg0: i32) -> (i32, i32) {
    %c0_i32 = arith.constant 0 : i32
    %c0_i32_0 = arith.constant 0 : i32
    %c0_i32_1 = arith.constant 0 : i32
    return %c0_i32, %c0_i32_0 : i32, i32
  }
  func.func @transform_8(%arg0: i32) -> (i32, i32) {
    %c0_i32 = arith.constant 0 : i32
    %c0_i32_0 = arith.constant 0 : i32
    %c0_i32_1 = arith.constant 0 : i32
    return %c0_i32, %c0_i32_0 : i32, i32
  }
  func.func @transform_10(%arg0: i32) -> (i32, i32) {
    %c0_i32 = arith.constant 0 : i32
    %c0_i32_0 = arith.constant 0 : i32
    %c0_i32_1 = arith.constant 0 : i32
    return %c0_i32, %c0_i32_0 : i32, i32
  }
  func.func @transform_11(%arg0: i32) -> (i32, i32) {
    %c0_i32 = arith.constant 0 : i32
    %c0_i32_0 = arith.constant 0 : i32
    %c0_i32_1 = arith.constant 0 : i32
    return %c0_i32, %c0_i32_0 : i32, i32
  }
}

</mosaic_0001>

<llo_original>
// kernel: advanced_loss.1
$region0: #{advanced_loss.1}
  #allocation0 [shape = 'u32[]', space=smem, size = 0x4, offset = 0x4, fixed_abs, tag = 'smem constant byte address 0x4 - core index']
  #allocation1 [shape = 'u32[144,128]{1,0:T(1,128)}', space=vmem, size = 0x12000, scoped, tag = 'internal scratch']
  #allocation2 [shape = 'bf16[256,768]{1,0:T(16,128)(2,1)}', space=vmem, size = 0x60000, scoped, tag = 'scratch operand']
  #allocation3 [shape = 'bf16[256,768]{1,0:T(16,128)(2,1)}', space=vmem, size = 0x60000, scoped, tag = 'scratch operand']
  #allocation4 [shape = 's32[2]{0}', space=sflag, size = 0x8, scoped, tag = 'scratch operand']
  #allocation12 [shape = 's32[]', space=sflag, size = 0x4, offset = 0, fixed_abs, tag = 'sflag constant byte address 0x0 - dummy sync flag']
  #allocation14 [shape = 's32[]', space=sflag, size = 0x4, offset = 0, fixed_abs, tag = 'sflag constant byte address 0x0 - dummy sync flag']
  %s0 = inlined_call_operand.vmem [shape: f32[8,256], index: 0, kind: input, shape index: {}]
  %s1 = inlined_call_operand.hbm [shape: f32[8,256], index: 1, kind: input, shape index: {}]
  %s2 = inlined_call_operand.hbm [shape: f32[8,64], index: 2, kind: input, shape index: {}]
  %s3 = inlined_call_operand.hbm [shape: f32[8,768], index: 3, kind: input, shape index: {}]
  %s4 = inlined_call_operand.hbm [shape: f32[8,768], index: 4, kind: input, shape index: {}]
  %s5 = inlined_call_operand.vmem [shape: f32[8,256], index: 5, kind: input, shape index: {}]
  %s6 = inlined_call_operand.vmem [shape: s32[8,1], index: 6, kind: input, shape index: {}]
  %s7 = inlined_call_operand.hbm [shape: bf16[256,768], index: 7, kind: input, shape index: {}]
  %s8 = inlined_call_operand.vmem [shape: f32[1,256], index: 8, kind: input, shape index: {}]
  %s9 = inlined_call_operand.hbm [shape: bf16[256,768], index: 9, kind: input, shape index: {}]
  %s10 = inlined_call_operand.vmem [shape: f32[1,256], index: 10, kind: input, shape index: {}]
  %s11 = inlined_call_operand.vmem [shape: f32[1,8], index: 11, kind: output, shape index: {}]
  %s12 = sld [smem:[#allocation0]]
  $region62: #{advanced_loss.1} parent=0
    _
  %s14 = ssub.s32 1, %s12
  %s15 = scalar_select 0, %s14, %s12
  $region1: #{advanced_loss.1} parent=0
    #allocation5 [shape = 'u8[8192]{0}', space=vmem, size = 0x2000, scoped, tag = 'input window, operand 1, single buffered']
    #allocation6 [shape = 's32[1]{0}', space=sflag, size = 0x4, scoped, tag = 'scoped memory for advanced_loss.1']
    #allocation7 [shape = 'u8[4096]{0}', space=vmem, size = 0x1000, scoped, tag = 'input window, operand 2, single buffered']
    #allocation8 [shape = 's32[1]{0}', space=sflag, size = 0x4, scoped, tag = 'scoped memory for advanced_loss.1']
    #allocation9 [shape = 'u8[24576]{0}', space=vmem, size = 0x6000, scoped, tag = 'input window, operand 3, single buffered']
    #allocation10 [shape = 'u8[24576]{0}', space=vmem, size = 0x6000, scoped, tag = 'input window, operand 4, single buffered']
    #allocation11 [shape = 's32[1]{0}', space=sflag, size = 0x4, scoped, tag = 'scoped memory for advanced_loss.1']
    #allocation13 [shape = 'u32[9]{0}', space=smem, size = 0x24, scoped, tag = 'DMA stride descriptor']
    #allocation15 [shape = 'u32[9]{0}', space=smem, size = 0x24, scoped, tag = 'DMA stride descriptor']
    %16 = vsyncpa [#allocation6], 0
    %17 = vsyncpa [#allocation8], 0
    %18 = vsyncpa [#allocation11], 0
    // Predicated region
    $region2: #{advanced_loss.1} parent=1 // pred_check
      _
    $region3: #{advanced_loss.1} parent=1 // pred_check_branch
      %20 = sbr.rel (0) target = $region5
    $region4: #{advanced_loss.1} parent=1 // pred_region
      _
    $region5: #{advanced_loss.1} parent=1 // pred_fallthru
      _
    // Predicated region
    $region6: #{advanced_loss.1} parent=1 // pred_check
      _
    $region7: #{advanced_loss.1} parent=1 // pred_check_branch
      %22 = sbr.rel (0) target = $region9
    $region8: #{advanced_loss.1} parent=1 // pred_region
      %s24 = ssub.s32 256, 256
      %25 = vsyncadd [#allocation6], %s24
      %s27 = sshll.u32 [#allocation5], 4
      %s28 = int_to_ptr.vmem [resolvable:$true] %s27
      %30 = dma.hbm_to_vmem [thread:$0]  %s1, 256, %s28, [#allocation6]
    $region9: #{advanced_loss.1} parent=1 // pred_fallthru
      _
    // Predicated region
    $region10: #{advanced_loss.1} parent=1 // pred_check
      _
    $region11: #{advanced_loss.1} parent=1 // pred_check_branch
      %32 = sbr.rel (0) target = $region13
    $region12: #{advanced_loss.1} parent=1 // pred_region
      %s34 = ssub.s32 128, 128
      %35 = vsyncadd [#allocation8], %s34
      %s37 = sshll.u32 [#allocation7], 4
      %s38 = int_to_ptr.vmem [resolvable:$true] %s37
      %40 = dma.hbm_to_vmem [thread:$0]  %s2, 128, %s38, [#allocation8]
    $region13: #{advanced_loss.1} parent=1 // pred_fallthru
      _
    // Predicated region
    $region14: #{advanced_loss.1} parent=1 // pred_check
      _
    $region15: #{advanced_loss.1} parent=1 // pred_check_branch
      %42 = sbr.rel (0) target = $region17
    $region16: #{advanced_loss.1} parent=1 // pred_region
      %s44 = ssub.s32 768, 768
      %45 = vsyncadd [#allocation8], %s44
      %s47 = sshll.u32 [#allocation9], 4
      %s48 = int_to_ptr.vmem [resolvable:$true] %s47
      %50 = dma.hbm_to_vmem [thread:$0]  %s3, 768, %s48, [#allocation8]
    $region17: #{advanced_loss.1} parent=1 // pred_fallthru
      _
    // Predicated region
    $region18: #{advanced_loss.1} parent=1 // pred_check
      _
    $region19: #{advanced_loss.1} parent=1 // pred_check_branch
      %52 = sbr.rel (0) target = $region21
    $region20: #{advanced_loss.1} parent=1 // pred_region
      %s54 = ssub.s32 768, 768
      %55 = vsyncadd [#allocation11], %s54
      %s57 = sshll.u32 [#allocation10], 4
      %s58 = int_to_ptr.vmem [resolvable:$true] %s57
      %60 = dma.hbm_to_vmem [thread:$0]  %s4, 768, %s58, [#allocation11]
    $region21: #{advanced_loss.1} parent=1 // pred_fallthru
      _
    // Predicated region
    $region22: #{advanced_loss.1} parent=1 // pred_check
      _
    $region23: #{advanced_loss.1} parent=1 // pred_check_branch
      %62 = sbr.rel (0) target = $region25
    $region24: #{advanced_loss.1} parent=1 // pred_region
      _
    $region25: #{advanced_loss.1} parent=1 // pred_fallthru
      _
    // Predicated region
    $region26: #{advanced_loss.1} parent=1 // pred_check
      _
    $region27: #{advanced_loss.1} parent=1 // pred_check_branch
      %64 = sbr.rel (0) target = $region29
    $region28: #{advanced_loss.1} parent=1 // pred_region
      _
    $region29: #{advanced_loss.1} parent=1 // pred_fallthru
      _
    // Predicated region
    $region30: #{advanced_loss.1} parent=1 // pred_check
      _
    $region31: #{advanced_loss.1} parent=1 // pred_check_branch
      %66 = sbr.rel (0) target = $region33
    $region32: #{advanced_loss.1} parent=1 // pred_region
      _
    $region33: #{advanced_loss.1} parent=1 // pred_fallthru
      _
    // Predicated region
    $region34: #{advanced_loss.1} parent=1 // pred_check
      _
    $region35: #{advanced_loss.1} parent=1 // pred_check_branch
      %68 = sbr.rel (0) target = $region37
    $region36: #{advanced_loss.1} parent=1 // pred_region
      _
    $region37: #{advanced_loss.1} parent=1 // pred_fallthru
      _
    // Predicated region
    $region38: #{advanced_loss.1} parent=1 // pred_check
      _
    $region39: #{advanced_loss.1} parent=1 // pred_check_branch
      %70 = sbr.rel (0) target = $region41
    $region40: #{advanced_loss.1} parent=1 // pred_region
      %71 = dma.done [#allocation6], 256
    $region41: #{advanced_loss.1} parent=1 // pred_fallthru
      _
    // Predicated region
    $region42: #{advanced_loss.1} parent=1 // pred_check
      _
    $region43: #{advanced_loss.1} parent=1 // pred_check_branch
      %73 = sbr.rel (0) target = $region45
    $region44: #{advanced_loss.1} parent=1 // pred_region
      %74 = dma.done [#allocation8], 128
    $region45: #{advanced_loss.1} parent=1 // pred_fallthru
      _
    // Predicated region
    $region46: #{advanced_loss.1} parent=1 // pred_check
      _
    $region47: #{advanced_loss.1} parent=1 // pred_check_branch
      %76 = sbr.rel (0) target = $region49
    $region48: #{advanced_loss.1} parent=1 // pred_region
      %77 = dma.done [#allocation8], 768
    $region49: #{advanced_loss.1} parent=1 // pred_fallthru
      _
    // Predicated region
    $region50: #{advanced_loss.1} parent=1 // pred_check
      _
    $region51: #{advanced_loss.1} parent=1 // pred_check_branch
      %79 = sbr.rel (0) target = $region53
    $region52: #{advanced_loss.1} parent=1 // pred_region
      %80 = dma.done [#allocation11], 768
    $region53: #{advanced_loss.1} parent=1 // pred_fallthru
      _
    %s82 = sshll.u32 1, 14
    %s83 = sxor.u32 4294967295, %s82
    %s85 = sld [smem:[#allocation0]]
    %s86 = sadd.s32 2, %s85
    %s88 = sshll.u32 7, 26
    %s89 = sxor.u32 4294967295, %s88
    %s90 = sand.u32 0, %s89
    %s91 = sshll.u32 %s86, 26
    %s92 = sor.u32 %s90, %s91
    %s93 = sshll.u32 [#allocation2], 4
    %s94 = int_to_ptr.vmem [resolvable:$true] %s93
    %97 = sst [smem:[#allocation13]] 768
    %s98 = scalar_lea.smem [#allocation13], 1
    %99 = sst [smem:[%s98]] 768
    %s100 = scalar_lea.smem [#allocation13], 2
    %101 = sst [smem:[%s100]] 6
    %s102 = scalar_lea.smem [#allocation13], 3
    %103 = sst [smem:[%s102]] 64
    %s104 = scalar_lea.smem [#allocation13], 4
    %105 = sst [smem:[%s104]] 128
    %s106 = scalar_lea.smem [#allocation13], 5
    %107 = sst [smem:[%s106]] 2
    %s108 = scalar_lea.smem [#allocation13], 6
    %109 = sst [smem:[%s108]] 384
    %s110 = scalar_lea.smem [#allocation13], 7
    %111 = sst [smem:[%s110]] 64
    %s112 = scalar_lea.smem [#allocation13], 8
    %113 = sst [smem:[%s112]] 4
    %115 = dma.general %s7, 12288, %s94, [#allocation4], [#allocation12], [#allocation13], %s92, 0
    %s116 = scalar_lea.sflag [#allocation4], 1
    %s118 = sshll.u32 1, 14
    %s119 = sxor.u32 4294967295, %s118
    %s121 = sadd.s32 2, %s85
    %s123 = sshll.u32 7, 26
    %s124 = sxor.u32 4294967295, %s123
    %s125 = sand.u32 0, %s124
    %s126 = sshll.u32 %s121, 26
    %s127 = sor.u32 %s125, %s126
    %s128 = sshll.u32 [#allocation3], 4
    %s129 = int_to_ptr.vmem [resolvable:$true] %s128
    %132 = sst [smem:[#allocation15]] 768
    %s133 = scalar_lea.smem [#allocation15], 1
    %134 = sst [smem:[%s133]] 768
    %s135 = scalar_lea.smem [#allocation15], 2
    %136 = sst [smem:[%s135]] 6
    %s137 = scalar_lea.smem [#allocation15], 3
    %138 = sst [smem:[%s137]] 64
    %s139 = scalar_lea.smem [#allocation15], 4
    %140 = sst [smem:[%s139]] 128
    %s141 = scalar_lea.smem [#allocation15], 5
    %142 = sst [smem:[%s141]] 2
    %s143 = scalar_lea.smem [#allocation15], 6
    %144 = sst [smem:[%s143]] 384
    %s145 = scalar_lea.smem [#allocation15], 7
    %146 = sst [smem:[%s145]] 64
    %s147 = scalar_lea.smem [#allocation15], 8
    %148 = sst [smem:[%s147]] 4
    %150 = dma.general %s9, 12288, %s129, %s116, [#allocation14], [#allocation15], %s127, 0
    %v151 = vld [vmem:[%s0] sm:$0xff]
    %v152 = vld [vmem:[%s0 + $0x8] sm:$0xff]
    %v153 = vmul.f32 %v151, %v151
    %v154 = vmul.f32 %v152, %v152
    %v155 = vadd.f32 %v153, %v154
    %156 = vadd.xlane.f32.xlu0 %v155
    %v157 = vpop.xlane.xlu0 %156
    %v158 = vmax.f32 %v157, 1e-24
    %v159 = vrsqrt.pop %v158
    %v160 = vmul.f32 %v151, %v159
    %v161 = vmul.f32 %v152, %v159
    %v162 = vld [vmem:[#allocation5] sm:$0xff]
    %v163 = vld [vmem:[#allocation5 + $0x8] sm:$0xff]
    %v164 = vmul.f32 %v162, %v162
    %v165 = vmul.f32 %v163, %v163
    %v166 = vadd.f32 %v164, %v165
    %167 = vadd.xlane.f32.xlu0 %v166
    %v168 = vpop.xlane.xlu0 %167
    %v169 = vmax.f32 %v168, 1e-24
    %v170 = vrsqrt.pop %v169
    %v171 = vmul.f32 %v162, %v170
    %v172 = vmul.f32 %v163, %v170
    %v173 = vld [vmem:[%s5] sm:$0xff]
    %v174 = vld [vmem:[%s5 + $0x8] sm:$0xff]
    %v175 = vmul.f32 %v173, %v173
    %v176 = vmul.f32 %v174, %v174
    %v177 = vadd.f32 %v175, %v176
    %178 = vadd.xlane.f32.xlu0 %v177
    %v179 = vpop.xlane.xlu0 %178
    %v180 = vmax.f32 %v179, 1e-24
    %v181 = vrsqrt.pop %v180
    %v182 = vmul.f32 %v173, %v181
    %v183 = vmul.f32 %v174, %v181
    %184 = vmatprep.subr.mxu0 %v172
    %185 = vmatpush1.xpose.msra.mxu0 %v171
    %186 = vmatprep.subr.mxu0 0.0
    %187 = vmatpush1.xpose.msra.mxu0 0.0
    %188 = vmatprep.subr.mxu0 0.0
    %189 = vmatpush1.xpose.msra.mxu0 0.0
    %190 = vmatprep.subr.mxu0 0.0
    %191 = vmatpush1.xpose.msra.mxu0 0.0
    %192 = vmatprep.subr.mxu0 0.0
    %193 = vmatpush1.xpose.msra.mxu0 0.0
    %194 = vmatprep.subr.mxu0 0.0
    %195 = vmatpush1.xpose.msra.mxu0 0.0
    %196 = vmatprep.subr.mxu0 0.0
    %197 = vmatpush1.xpose.msra.mxu0 0.0
    %198 = vmatprep.subr.mxu0 0.0
    %199 = vmatpush1.xpose.msra.mxu0 0.0
    %200 = vmatprep.subr.mxu0 0.0
    %201 = vmatpush1.xpose.msra.mxu0 0.0
    %202 = vmatprep.subr.mxu0 0.0
    %203 = vmatpush1.xpose.msra.mxu0 0.0
    %204 = vmatprep.subr.mxu0 0.0
    %205 = vmatpush1.xpose.msra.mxu0 0.0
    %206 = vmatprep.subr.mxu0 0.0
    %207 = vmatpush1.xpose.msra.mxu0 0.0
    %208 = vmatprep.subr.mxu0 0.0
    %209 = vmatpush1.xpose.msra.mxu0 0.0
    %210 = vmatprep.subr.mxu0 0.0
    %211 = vmatpush1.xpose.msra.mxu0 0.0
    %212 = vmatprep.subr.mxu0 0.0
    %213 = vmatpush1.xpose.msra.mxu0 0.0
    %214 = vmatprep.subr.mxu0 0.0
    %215 = vmatpush1.xpose.msra.mxu0 0.0
    %216 = vmatprep.subr.mxu0 0.0
    %217 = vmatpush1.xpose.msra.mxu0 0.0
    %218 = vmatprep.subr.mxu0 0.0
    %219 = vmatpush1.xpose.msra.mxu0 0.0
    %220 = vmatprep.subr.mxu0 0.0
    %221 = vmatpush1.xpose.msra.mxu0 0.0
    %222 = vmatprep.subr.mxu0 0.0
    %223 = vmatpush1.xpose.msra.mxu0 0.0
    %224 = vmatprep.subr.mxu0 0.0
    %225 = vmatpush1.xpose.msra.mxu0 0.0
    %226 = vmatprep.subr.mxu0 0.0
    %227 = vmatpush1.xpose.msra.mxu0 0.0
    %228 = vmatprep.subr.mxu0 0.0
    %229 = vmatpush1.xpose.msra.mxu0 0.0
    %230 = vmatprep.subr.mxu0 0.0
    %231 = vmatpush1.xpose.msra.mxu0 0.0
    %232 = vmatprep.subr.mxu0 0.0
    %233 = vmatpush1.xpose.msra.mxu0 0.0
    %234 = vmatprep.subr.mxu0 0.0
    %235 = vmatpush1.xpose.msra.mxu0 0.0
    %236 = vmatprep.subr.mxu0 0.0
    %237 = vmatpush1.xpose.msra.mxu0 0.0
    %238 = vmatprep.subr.mxu0 0.0
    %239 = vmatpush1.xpose.msra.mxu0 0.0
    %240 = vmatprep.subr.mxu0 0.0
    %241 = vmatpush1.xpose.msra.mxu0 0.0
    %242 = vmatprep.subr.mxu0 0.0
    %243 = vmatpush1.xpose.msra.mxu0 0.0
    %244 = vmatprep.subr.mxu0 0.0
    %245 = vmatpush1.xpose.msra.mxu0 0.0
    %246 = vmatprep.subr.mxu0 0.0
    %247 = vmatpush1.xpose.msra.mxu0 0.0
    %248 = vmatprep.mubr.f32.mxu0 %v161
    %249 = vmatmul.mubr.f32.gmra.mrb[0].mxu0 %v160
    %v250 = vpop.f32.mrb[0].mxu0
    %v251 = vadd.f32 0.0, %v250
    %v252 = vpop.f32.mrb[0].mxu0
    %253 = vdwg.mxu0
    %v254 = vmul.f32 %v251, 14.285714
    %v255 = vmul.f32 %v160, %v171
    %v256 = vmul.f32 %v161, %v172
    %v257 = vadd.f32 %v255, %v256
    %258 = vadd.xlane.f32.xlu0 %v257
    %v259 = vpop.xlane.xlu0 %258
    %v260 = vadd.f32 %v259, 0.0
    %v261 = vrot.slane %v260, 4
    %v262 = vadd.f32 %v260, %v261
    %v263 = vrot.slane %v262, 2
    %v264 = vadd.f32 %v262, %v263
    %v265 = vrot.slane %v264, 1
    %v266 = vadd.f32 %v264, %v265
    %v267 = vmul.f32 %v266, 14.285714
    %vm268 = vcmask 64512
    %v269 = vsel %vm268, %v254, -inf
    %270 = vmax.xlane.f32.xlu0 %v269
    %v271 = vpop.xlane.xlu0 %270
    %v272 = vsub.f32 %v254, %v271
    %v273 = vmul.f32 %v272, 1.442695
    %v274 = vpow.pop %v273
    %v275 = vsel %vm268, %v274, 0.0
    %276 = vadd.xlane.f32.xlu0 %v275
    %v277 = vpop.xlane.xlu0 %276
    %v278 = vlog2.pop %v277
    %v279 = vmul.f32 %v278, 0.6931472
    %v280 = vadd.f32 %v279, %v271
    %v281 = vadd.f32 %v280, 0.0
    %v282 = vrot.slane %v281, 4
    %v283 = vadd.f32 %v281, %v282
    %v284 = vrot.slane %v283, 2
    %v285 = vadd.f32 %v283, %v284
    %v286 = vrot.slane %v285, 1
    %v287 = vadd.f32 %v285, %v286
    %v288 = vsub.f32 %v287, %v267
    %v289 = vrot.slane %v269, 4
    %v290 = vmax.f32 %v269, %v289
    %v291 = vrot.slane %v290, 2
    %v292 = vmax.f32 %v290, %v291
    %v293 = vrot.slane %v292, 1
    %v294 = vmax.f32 %v292, %v293
    %v295 = vsub.f32 %v254, %v294
    %v296 = vmul.f32 %v295, 1.442695
    %v297 = vpow.pop %v296
    %v298 = vsel %vm268, %v297, 0.0
    %v299 = vrot.slane %v298, 4
    %v300 = vadd.f32 %v298, %v299
    %v301 = vrot.slane %v300, 2
    %v302 = vadd.f32 %v300, %v301
    %v303 = vrot.slane %v302, 1
    %v304 = vadd.f32 %v302, %v303
    %v305 = vlog2.pop %v304
    %v306 = vmul.f32 %v305, 0.6931472
    %v307 = vadd.f32 %v306, %v294
    %v308 = vsel %vm268, %v307, 0.0
    %309 = vadd.xlane.f32.xlu0 %v308
    %v310 = vpop.xlane.xlu0 %309
    %v311 = vadd.f32 %v310, 0.0
    %v312 = vsub.f32 %v311, %v267
    %v313 = vadd.f32 %v288, %v312
    %v314 = vmul.f32 %v313, 0.0625
    %v315 = vld [vmem:[#allocation7] sm:$0xff]
    %v316 = vld [vmem:[%s6] sm:$0xff]
    %vm317 = vcmask 523264
    %v318 = vsel %vm317, %v315, -inf
    %319 = vmax.xlane.f32.xlu0 %v318
    %v320 = vpop.xlane.xlu0 %319
    %v321 = vsub.f32 %v315, %v320
    %v322 = vmul.f32 %v321, 1.442695
    %v323 = vpow.pop %v322
    %v324 = vsel %vm317, %v323, 0.0
    %325 = vadd.xlane.f32.xlu0 %v324
    %v326 = vpop.xlane.xlu0 %325
    %v327 = vlog2.pop %v326
    %v328 = vmul.f32 %v327, 0.6931472
    %v329 = vadd.f32 %v328, %v320
    %v330 = vlaneseq
    %v331 = vand.u32 %v330, 127
    %332 = vset.pattern.permute.xlu0 0
    %333 = vperm.xlu0 %332, %v316
    %v334 = vpop.permute.xlu0 %333
    %vm335 = vcmp.eq.s32.totalorder %v331, %v334
    %v336 = vsel %vm335, %v315, 0.0
    %v337 = vsel %vm317, %v336, 0.0
    %338 = vadd.xlane.f32.xlu0 %v337
    %v339 = vpop.xlane.xlu0 %338
    %v340 = vsub.f32 %v329, %v339
    %v341 = vadd.f32 %v340, 0.0
    %v342 = vrot.slane %v341, 4
    %v343 = vadd.f32 %v341, %v342
    %v344 = vrot.slane %v343, 2
    %v345 = vadd.f32 %v343, %v344
    %v346 = vrot.slane %v345, 1
    %v347 = vadd.f32 %v345, %v346
    %v348 = vrcp.pop 8.0
    %v349 = vmul.f32 %v347, %v348
    %v350 = vld [vmem:[#allocation9] sm:$0xff]
    %v351 = vld [vmem:[#allocation9 + $0x8] sm:$0xff]
    %v352 = vld [vmem:[#allocation9 + $0x10] sm:$0xff]
    %v353 = vld [vmem:[#allocation9 + $0x18] sm:$0xff]
    %v354 = vld [vmem:[#allocation9 + $0x20] sm:$0xff]
    %v355 = vld [vmem:[#allocation9 + $0x28] sm:$0xff]
    %v356 = vpack.c.bf16 %v350, %v350
    %v357 = vpack.c.bf16 %v351, %v351
    %v358 = vpack.c.bf16 %v352, %v352
    %v359 = vpack.c.bf16 %v353, %v353
    %v360 = vpack.c.bf16 %v354, %v354
    %v361 = vpack.c.bf16 %v355, %v355
    %v362 = vld [vmem:[#allocation10] sm:$0xff]
    %v363 = vld [vmem:[#allocation10 + $0x8] sm:$0xff]
    %v364 = vld [vmem:[#allocation10 + $0x10] sm:$0xff]
    %v365 = vld [vmem:[#allocation10 + $0x18] sm:$0xff]
    %v366 = vld [vmem:[#allocation10 + $0x20] sm:$0xff]
    %v367 = vld [vmem:[#allocation10 + $0x28] sm:$0xff]
    %v368 = vpack.c.bf16 %v362, %v362
    %v369 = vpack.c.bf16 %v363, %v363
    %v370 = vpack.c.bf16 %v364, %v364
    %v371 = vpack.c.bf16 %v365, %v365
    %v372 = vpack.c.bf16 %v366, %v366
    %v373 = vpack.c.bf16 %v367, %v367
    %s374 = smul.u32 4, 32
    %s375 = smul.u32 %s374, 6
    %s376 = sshll.u32 %s375, 4
    %377 = dma.done [#allocation4], %s376
    %s378 = sshll.u32 %s375, 4
    %379 = dma.done %s116, %s378
    %v380 = vld [vmem:[#allocation2] sm:$0xff]
    %v381 = vld [vmem:[#allocation2 + $0x8] sm:$0xff]
    %v382 = vld [vmem:[#allocation2 + $0x10] sm:$0xff]
    %v383 = vld [vmem:[#allocation2 + $0x18] sm:$0xff]
    %v384 = vld [vmem:[#allocation2 + $0x20] sm:$0xff]
    %v385 = vld [vmem:[#allocation2 + $0x28] sm:$0xff]
    %v386 = vld [vmem:[#allocation2 + $0x30] sm:$0xff]
    %v387 = vld [vmem:[#allocation2 + $0x38] sm:$0xff]
    %v388 = vld [vmem:[#allocation2 + $0x40] sm:$0xff]
    %v389 = vld [vmem:[#allocation2 + $0x48] sm:$0xff]
    %v390 = vld [vmem:[#allocation2 + $0x50] sm:$0xff]
    %v391 = vld [vmem:[#allocation2 + $0x58] sm:$0xff]
    %v392 = vld [vmem:[#allocation2 + $0x60] sm:$0xff]
    %v393 = vld [vmem:[#allocation2 + $0x68] sm:$0xff]
    %v394 = vld [vmem:[#allocation2 + $0x70] sm:$0xff]
    %v395 = vld [vmem:[#allocation2 + $0x78] sm:$0xff]
    %v396 = vld [vmem:[#allocation2 + $0x80] sm:$0xff]
    %v397 = vld [vmem:[#allocation2 + $0x88] sm:$0xff]
    %v398 = vld [vmem:[#allocation2 + $0x90] sm:$0xff]
    %v399 = vld [vmem:[#allocation2 + $0x98] sm:$0xff]
    %v400 = vld [vmem:[#allocation2 + $0xa0] sm:$0xff]
    %v401 = vld [vmem:[#allocation2 + $0xa8] sm:$0xff]
    %v402 = vld [vmem:[#allocation2 + $0xb0] sm:$0xff]
    %v403 = vld [vmem:[#allocation2 + $0xb8] sm:$0xff]
    %v404 = vld [vmem:[#allocation2 + $0xc0] sm:$0xff]
    %v405 = vld [vmem:[#allocation2 + $0xc8] sm:$0xff]
    %v406 = vld [vmem:[#allocation2 + $0xd0] sm:$0xff]
    %v407 = vld [vmem:[#allocation2 + $0xd8] sm:$0xff]
    %v408 = vld [vmem:[#allocation2 + $0xe0] sm:$0xff]
    %v409 = vld [vmem:[#allocation2 + $0xe8] sm:$0xff]
    %v410 = vld [vmem:[#allocation2 + $0xf0] sm:$0xff]
    %v411 = vld [vmem:[#allocation2 + $0xf8] sm:$0xff]
    %v412 = vld [vmem:[#allocation2 + $0x100] sm:$0xff]
    %v413 = vld [vmem:[#allocation2 + $0x108] sm:$0xff]
    %v414 = vld [vmem:[#allocation2 + $0x110] sm:$0xff]
    %v415 = vld [vmem:[#allocation2 + $0x118] sm:$0xff]
    %v416 = vld [vmem:[#allocation2 + $0x120] sm:$0xff]
    %v417 = vld [vmem:[#allocation2 + $0x128] sm:$0xff]
    %v418 = vld [vmem:[#allocation2 + $0x130] sm:$0xff]
    %v419 = vld [vmem:[#allocation2 + $0x138] sm:$0xff]
    %v420 = vld [vmem:[#allocation2 + $0x140] sm:$0xff]
    %v421 = vld [vmem:[#allocation2 + $0x148] sm:$0xff]
    %v422 = vld [vmem:[#allocation2 + $0x150] sm:$0xff]
    %v423 = vld [vmem:[#allocation2 + $0x158] sm:$0xff]
    %v424 = vld [vmem:[#allocation2 + $0x160] sm:$0xff]
    %v425 = vld [vmem:[#allocation2 + $0x168] sm:$0xff]
    %v426 = vld [vmem:[#allocation2 + $0x170] sm:$0xff]
    %v427 = vld [vmem:[#allocation2 + $0x178] sm:$0xff]
    %v428 = vld [vmem:[#allocation2 + $0x180] sm:$0xff]
    %v429 = vld [vmem:[#allocation2 + $0x188] sm:$0xff]
    %v430 = vld [vmem:[#allocation2 + $0x190] sm:$0xff]
    %v431 = vld [vmem:[#allocation2 + $0x198] sm:$0xff]
    %v432 = vld [vmem:[#allocation2 + $0x1a0] sm:$0xff]
    %v433 = vld [vmem:[#allocation2 + $0x1a8] sm:$0xff]
    %v434 = vld [vmem:[#allocation2 + $0x1b0] sm:$0xff]
    %v435 = vld [vmem:[#allocation2 + $0x1b8] sm:$0xff]
    %v436 = vld [vmem:[#allocation2 + $0x1c0] sm:$0xff]
    %v437 = vld [vmem:[#allocation2 + $0x1c8] sm:$0xff]
    %v438 = vld [vmem:[#allocation2 + $0x1d0] sm:$0xff]
    %v439 = vld [vmem:[#allocation2 + $0x1d8] sm:$0xff]
    %v440 = vld [vmem:[#allocation2 + $0x1e0] sm:$0xff]
    %v441 = vld [vmem:[#allocation2 + $0x1e8] sm:$0xff]
    %v442 = vld [vmem:[#allocation2 + $0x1f0] sm:$0xff]
    %v443 = vld [vmem:[#allocation2 + $0x1f8] sm:$0xff]
    %v444 = vld [vmem:[#allocation2 + $0x200] sm:$0xff]
    %v445 = vld [vmem:[#allocation2 + $0x208] sm:$0xff]
    %v446 = vld [vmem:[#allocation2 + $0x210] sm:$0xff]
    %v447 = vld [vmem:[#allocation2 + $0x218] sm:$0xff]
    %v448 = vld [vmem:[#allocation2 + $0x220] sm:$0xff]
    %v449 = vld [vmem:[#allocation2 + $0x228] sm:$0xff]
    %v450 = vld [vmem:[#allocation2 + $0x230] sm:$0xff]
    %v451 = vld [vmem:[#allocation2 + $0x238] sm:$0xff]
    %v452 = vld [vmem:[#allocation2 + $0x240] sm:$0xff]
    %v453 = vld [vmem:[#allocation2 + $0x248] sm:$0xff]
    %v454 = vld [vmem:[#allocation2 + $0x250] sm:$0xff]
    %v455 = vld [vmem:[#allocation2 + $0x258] sm:$0xff]
    %v456 = vld [vmem:[#allocation2 + $0x260] sm:$0xff]
    %v457 = vld [vmem:[#allocation2 + $0x268] sm:$0xff]
    %v458 = vld [vmem:[#allocation2 + $0x270] sm:$0xff]
    %v459 = vld [vmem:[#allocation2 + $0x278] sm:$0xff]
    %v460 = vld [vmem:[#allocation2 + $0x280] sm:$0xff]
    %v461 = vld [vmem:[#allocation2 + $0x288] sm:$0xff]
    %v462 = vld [vmem:[#allocation2 + $0x290] sm:$0xff]
    %v463 = vld [vmem:[#allocation2 + $0x298] sm:$0xff]
    %v464 = vld [vmem:[#allocation2 + $0x2a0] sm:$0xff]
    %v465 = vld [vmem:[#allocation2 + $0x2a8] sm:$0xff]
    %v466 = vld [vmem:[#allocation2 + $0x2b0] sm:$0xff]
    %v467 = vld [vmem:[#allocation2 + $0x2b8] sm:$0xff]
    %v468 = vld [vmem:[#allocation2 + $0x2c0] sm:$0xff]
    %v469 = vld [vmem:[#allocation2 + $0x2c8] sm:$0xff]
    %v470 = vld [vmem:[#allocation2 + $0x2d0] sm:$0xff]
    %v471 = vld [vmem:[#allocation2 + $0x2d8] sm:$0xff]
    %v472 = vld [vmem:[#allocation2 + $0x2e0] sm:$0xff]
    %v473 = vld [vmem:[#allocation2 + $0x2e8] sm:$0xff]
    %v474 = vld [vmem:[#allocation2 + $0x2f0] sm:$0xff]
    %v475 = vld [vmem:[#allocation2 + $0x2f8] sm:$0xff]
    %v476 = vld [vmem:[%s8] sm:$0x3]
    %v478 = vlaneseq
    %v479 = vshrl.u32 %v478, 7
    %v480 = vsub.s32 0, %v479
    %v481 = vrot.slane %v476, %v480
    %v482 = vlaneseq
    %v483 = vshrl.u32 %v482, 7
    %v484 = vsub.s32 1, %v483
    %v485 = vrot.slane %v476, %v484
    %488 = vmatprep.subr.bf16.mxu0 %v381
    %489 = vmatpush1.bf16.xpose.msra.mxu0 %v380
    %490 = vmatprep.subr.bf16.mxu0 %v387
    %491 = vmatpush1.bf16.xpose.msra.mxu0 %v386
    %492 = vmatprep.subr.bf16.mxu0 %v393
    %493 = vmatpush1.bf16.xpose.msra.mxu0 %v392
    %494 = vmatprep.subr.bf16.mxu0 %v399
    %495 = vmatpush1.bf16.xpose.msra.mxu0 %v398
    %496 = vmatprep.subr.bf16.mxu0 %v405
    %497 = vmatpush1.bf16.xpose.msra.mxu0 %v404
    %498 = vmatprep.subr.bf16.mxu0 %v411
    %499 = vmatpush1.bf16.xpose.msra.mxu0 %v410
    %500 = vmatprep.subr.bf16.mxu0 %v417
    %501 = vmatpush1.bf16.xpose.msra.mxu0 %v416
    %502 = vmatprep.subr.bf16.mxu0 %v423
    %503 = vmatpush1.bf16.xpose.msra.mxu0 %v422
    %504 = vmatprep.subr.bf16.mxu0 %v429
    %505 = vmatpush1.bf16.xpose.msra.mxu0 %v428
    %506 = vmatprep.subr.bf16.mxu0 %v435
    %507 = vmatpush1.bf16.xpose.msra.mxu0 %v434
    %508 = vmatprep.subr.bf16.mxu0 %v441
    %509 = vmatpush1.bf16.xpose.msra.mxu0 %v440
    %510 = vmatprep.subr.bf16.mxu0 %v447
    %511 = vmatpush1.bf16.xpose.msra.mxu0 %v446
    %512 = vmatprep.subr.bf16.mxu0 %v453
    %513 = vmatpush1.bf16.xpose.msra.mxu0 %v452
    %514 = vmatprep.subr.bf16.mxu0 %v459
    %515 = vmatpush1.bf16.xpose.msra.mxu0 %v458
    %516 = vmatprep.subr.bf16.mxu0 %v465
    %517 = vmatpush1.bf16.xpose.msra.mxu0 %v464
    %518 = vmatprep.subr.bf16.mxu0 %v471
    %519 = vmatpush1.bf16.xpose.msra.mxu0 %v470
    %520 = vmatprep.mubr.bf16.mxu0 %v357
    %521 = vmatmul.mubr.bf16.gmra.mrb[0].mxu0 %v356
    %v522 = vpop.f32.mrb[0].mxu0
    %v523 = vadd.f32 %v481, %v522
    %v524 = vpop.f32.mrb[0].mxu0
    %v525 = vadd.f32 %v485, %v524
    %v526 = vpop.f32.mrb[0].mxu0
    %v527 = vpop.f32.mrb[0].mxu0
    %528 = vdwg.mxu0
    %529 = vmatprep.subr.bf16.mxu0 %v383
    %530 = vmatpush1.bf16.xpose.msra.mxu0 %v382
    %531 = vmatprep.subr.bf16.mxu0 %v389
    %532 = vmatpush1.bf16.xpose.msra.mxu0 %v388
    %533 = vmatprep.subr.bf16.mxu0 %v395
    %534 = vmatpush1.bf16.xpose.msra.mxu0 %v394
    %535 = vmatprep.subr.bf16.mxu0 %v401
    %536 = vmatpush1.bf16.xpose.msra.mxu0 %v400
    %537 = vmatprep.subr.bf16.mxu0 %v407
    %538 = vmatpush1.bf16.xpose.msra.mxu0 %v406
    %539 = vmatprep.subr.bf16.mxu0 %v413
    %540 = vmatpush1.bf16.xpose.msra.mxu0 %v412
    %541 = vmatprep.subr.bf16.mxu0 %v419
    %542 = vmatpush1.bf16.xpose.msra.mxu0 %v418
    %543 = vmatprep.subr.bf16.mxu0 %v425
    %544 = vmatpush1.bf16.xpose.msra.mxu0 %v424
    %545 = vmatprep.subr.bf16.mxu0 %v431
    %546 = vmatpush1.bf16.xpose.msra.mxu0 %v430
    %547 = vmatprep.subr.bf16.mxu0 %v437
    %548 = vmatpush1.bf16.xpose.msra.mxu0 %v436
    %549 = vmatprep.subr.bf16.mxu0 %v443
    %550 = vmatpush1.bf16.xpose.msra.mxu0 %v442
    %551 = vmatprep.subr.bf16.mxu0 %v449
    %552 = vmatpush1.bf16.xpose.msra.mxu0 %v448
    %553 = vmatprep.subr.bf16.mxu0 %v455
    %554 = vmatpush1.bf16.xpose.msra.mxu0 %v454
    %555 = vmatprep.subr.bf16.mxu0 %v461
    %556 = vmatpush1.bf16.xpose.msra.mxu0 %v460
    %557 = vmatprep.subr.bf16.mxu0 %v467
    %558 = vmatpush1.bf16.xpose.msra.mxu0 %v466
    %559 = vmatprep.subr.bf16.mxu0 %v473
    %560 = vmatpush1.bf16.xpose.msra.mxu0 %v472
    %561 = vmatprep.mubr.bf16.mxu0 %v359
    %562 = vmatmul.mubr.bf16.gmra.mrb[0].mxu0 %v358
    %v563 = vpop.f32.mrb[0].mxu0
    %v564 = vadd.f32 %v523, %v563
    %v565 = vpop.f32.mrb[0].mxu0
    %v566 = vadd.f32 %v525, %v565
    %v567 = vpop.f32.mrb[0].mxu0
    %v568 = vpop.f32.mrb[0].mxu0
    %569 = vdwg.mxu0
    %570 = vmatprep.subr.bf16.mxu0 %v385
    %571 = vmatpush1.bf16.xpose.msra.mxu0 %v384
    %572 = vmatprep.subr.bf16.mxu0 %v391
    %573 = vmatpush1.bf16.xpose.msra.mxu0 %v390
    %574 = vmatprep.subr.bf16.mxu0 %v397
    %575 = vmatpush1.bf16.xpose.msra.mxu0 %v396
    %576 = vmatprep.subr.bf16.mxu0 %v403
    %577 = vmatpush1.bf16.xpose.msra.mxu0 %v402
    %578 = vmatprep.subr.bf16.mxu0 %v409
    %579 = vmatpush1.bf16.xpose.msra.mxu0 %v408
    %580 = vmatprep.subr.bf16.mxu0 %v415
    %581 = vmatpush1.bf16.xpose.msra.mxu0 %v414
    %582 = vmatprep.subr.bf16.mxu0 %v421
    %583 = vmatpush1.bf16.xpose.msra.mxu0 %v420
    %584 = vmatprep.subr.bf16.mxu0 %v427
    %585 = vmatpush1.bf16.xpose.msra.mxu0 %v426
    %586 = vmatprep.subr.bf16.mxu0 %v433
    %587 = vmatpush1.bf16.xpose.msra.mxu0 %v432
    %588 = vmatprep.subr.bf16.mxu0 %v439
    %589 = vmatpush1.bf16.xpose.msra.mxu0 %v438
    %590 = vmatprep.subr.bf16.mxu0 %v445
    %591 = vmatpush1.bf16.xpose.msra.mxu0 %v444
    %592 = vmatprep.subr.bf16.mxu0 %v451
    %593 = vmatpush1.bf16.xpose.msra.mxu0 %v450
    %594 = vmatprep.subr.bf16.mxu0 %v457
    %595 = vmatpush1.bf16.xpose.msra.mxu0 %v456
    %596 = vmatprep.subr.bf16.mxu0 %v463
    %597 = vmatpush1.bf16.xpose.msra.mxu0 %v462
    %598 = vmatprep.subr.bf16.mxu0 %v469
    %599 = vmatpush1.bf16.xpose.msra.mxu0 %v468
    %600 = vmatprep.subr.bf16.mxu0 %v475
    %601 = vmatpush1.bf16.xpose.msra.mxu0 %v474
    %602 = vmatprep.mubr.bf16.mxu0 %v361
    %603 = vmatmul.mubr.bf16.gmra.mrb[0].mxu0 %v360
    %v604 = vpop.f32.mrb[0].mxu0
    %v605 = vadd.f32 %v564, %v604
    %v606 = vpop.f32.mrb[0].mxu0
    %v607 = vadd.f32 %v566, %v606
    %v608 = vpop.f32.mrb[0].mxu0
    %v609 = vpop.f32.mrb[0].mxu0
    %610 = vdwg.mxu0
    %v611 = vld [vmem:[#allocation3] sm:$0xff]
    %v612 = vld [vmem:[#allocation3 + $0x8] sm:$0xff]
    %v613 = vld [vmem:[#allocation3 + $0x10] sm:$0xff]
    %v614 = vld [vmem:[#allocation3 + $0x18] sm:$0xff]
    %v615 = vld [vmem:[#allocation3 + $0x20] sm:$0xff]
    %v616 = vld [vmem:[#allocation3 + $0x28] sm:$0xff]
    %v617 = vld [vmem:[#allocation3 + $0x30] sm:$0xff]
    %v618 = vld [vmem:[#allocation3 + $0x38] sm:$0xff]
    %v619 = vld [vmem:[#allocation3 + $0x40] sm:$0xff]
    %v620 = vld [vmem:[#allocation3 + $0x48] sm:$0xff]
    %v621 = vld [vmem:[#allocation3 + $0x50] sm:$0xff]
    %v622 = vld [vmem:[#allocation3 + $0x58] sm:$0xff]
    %v623 = vld [vmem:[#allocation3 + $0x60] sm:$0xff]
    %v624 = vld [vmem:[#allocation3 + $0x68] sm:$0xff]
    %v625 = vld [vmem:[#allocation3 + $0x70] sm:$0xff]
    %v626 = vld [vmem:[#allocation3 + $0x78] sm:$0xff]
    %v627 = vld [vmem:[#allocation3 + $0x80] sm:$0xff]
    %v628 = vld [vmem:[#allocation3 + $0x88] sm:$0xff]
    %v629 = vld [vmem:[#allocation3 + $0x90] sm:$0xff]
    %v630 = vld [vmem:[#allocation3 + $0x98] sm:$0xff]
    %v631 = vld [vmem:[#allocation3 + $0xa0] sm:$0xff]
    %v632 = vld [vmem:[#allocation3 + $0xa8] sm:$0xff]
    %v633 = vld [vmem:[#allocation3 + $0xb0] sm:$0xff]
    %v634 = vld [vmem:[#allocation3 + $0xb8] sm:$0xff]
    %v635 = vld [vmem:[#allocation3 + $0xc0] sm:$0xff]
    %v636 = vld [vmem:[#allocation3 + $0xc8] sm:$0xff]
    %v637 = vld [vmem:[#allocation3 + $0xd0] sm:$0xff]
    %v638 = vld [vmem:[#allocation3 + $0xd8] sm:$0xff]
    %v639 = vld [vmem:[#allocation3 + $0xe0] sm:$0xff]
    %v640 = vld [vmem:[#allocation3 + $0xe8] sm:$0xff]
    %v641 = vld [vmem:[#allocation3 + $0xf0] sm:$0xff]
    %v642 = vld [vmem:[#allocation3 + $0xf8] sm:$0xff]
    %v643 = vld [vmem:[#allocation3 + $0x100] sm:$0xff]
    %v644 = vld [vmem:[#allocation3 + $0x108] sm:$0xff]
    %v645 = vld [vmem:[#allocation3 + $0x110] sm:$0xff]
    %v646 = vld [vmem:[#allocation3 + $0x118] sm:$0xff]
    %v647 = vld [vmem:[#allocation3 + $0x120] sm:$0xff]
    %v648 = vld [vmem:[#allocation3 + $0x128] sm:$0xff]
    %v649 = vld [vmem:[#allocation3 + $0x130] sm:$0xff]
    %v650 = vld [vmem:[#allocation3 + $0x138] sm:$0xff]
    %v651 = vld [vmem:[#allocation3 + $0x140] sm:$0xff]
    %v652 = vld [vmem:[#allocation3 + $0x148] sm:$0xff]
    %v653 = vld [vmem:[#allocation3 + $0x150] sm:$0xff]
    %v654 = vld [vmem:[#allocation3 + $0x158] sm:$0xff]
    %v655 = vld [vmem:[#allocation3 + $0x160] sm:$0xff]
    %v656 = vld [vmem:[#allocation3 + $0x168] sm:$0xff]
    %v657 = vld [vmem:[#allocation3 + $0x170] sm:$0xff]
    %v658 = vld [vmem:[#allocation3 + $0x178] sm:$0xff]
    %v659 = vld [vmem:[#allocation3 + $0x180] sm:$0xff]
    %v660 = vld [vmem:[#allocation3 + $0x188] sm:$0xff]
    %v661 = vld [vmem:[#allocation3 + $0x190] sm:$0xff]
    %v662 = vld [vmem:[#allocation3 + $0x198] sm:$0xff]
    %v663 = vld [vmem:[#allocation3 + $0x1a0] sm:$0xff]
    %v664 = vld [vmem:[#allocation3 + $0x1a8] sm:$0xff]
    %v665 = vld [vmem:[#allocation3 + $0x1b0] sm:$0xff]
    %v666 = vld [vmem:[#allocation3 + $0x1b8] sm:$0xff]
    %v667 = vld [vmem:[#allocation3 + $0x1c0] sm:$0xff]
    %v668 = vld [vmem:[#allocation3 + $0x1c8] sm:$0xff]
    %v669 = vld [vmem:[#allocation3 + $0x1d0] sm:$0xff]
    %v670 = vld [vmem:[#allocation3 + $0x1d8] sm:$0xff]
    %v671 = vld [vmem:[#allocation3 + $0x1e0] sm:$0xff]
    %v672 = vld [vmem:[#allocation3 + $0x1e8] sm:$0xff]
    %v673 = vld [vmem:[#allocation3 + $0x1f0] sm:$0xff]
    %v674 = vld [vmem:[#allocation3 + $0x1f8] sm:$0xff]
    %v675 = vld [vmem:[#allocation3 + $0x200] sm:$0xff]
    %v676 = vld [vmem:[#allocation3 + $0x208] sm:$0xff]
    %v677 = vld [vmem:[#allocation3 + $0x210] sm:$0xff]
    %v678 = vld [vmem:[#allocation3 + $0x218] sm:$0xff]
    %v679 = vld [vmem:[#allocation3 + $0x220] sm:$0xff]
    %v680 = vld [vmem:[#allocation3 + $0x228] sm:$0xff]
    %v681 = vld [vmem:[#allocation3 + $0x230] sm:$0xff]
    %v682 = vld [vmem:[#allocation3 + $0x238] sm:$0xff]
    %v683 = vld [vmem:[#allocation3 + $0x240] sm:$0xff]
    %v684 = vld [vmem:[#allocation3 + $0x248] sm:$0xff]
    %v685 = vld [vmem:[#allocation3 + $0x250] sm:$0xff]
    %v686 = vld [vmem:[#allocation3 + $0x258] sm:$0xff]
    %v687 = vld [vmem:[#allocation3 + $0x260] sm:$0xff]
    %v688 = vld [vmem:[#allocation3 + $0x268] sm:$0xff]
    %v689 = vld [vmem:[#allocation3 + $0x270] sm:$0xff]
    %v690 = vld [vmem:[#allocation3 + $0x278] sm:$0xff]
    %v691 = vld [vmem:[#allocation3 + $0x280] sm:$0xff]
    %v692 = vld [vmem:[#allocation3 + $0x288] sm:$0xff]
    %v693 = vld [vmem:[#allocation3 + $0x290] sm:$0xff]
    %v694 = vld [vmem:[#allocation3 + $0x298] sm:$0xff]
    %v695 = vld [vmem:[#allocation3 + $0x2a0] sm:$0xff]
    %v696 = vld [vmem:[#allocation3 + $0x2a8] sm:$0xff]
    %v697 = vld [vmem:[#allocation3 + $0x2b0] sm:$0xff]
    %v698 = vld [vmem:[#allocation3 + $0x2b8] sm:$0xff]
    %v699 = vld [vmem:[#allocation3 + $0x2c0] sm:$0xff]
    %v700 = vld [vmem:[#allocation3 + $0x2c8] sm:$0xff]
    %v701 = vld [vmem:[#allocation3 + $0x2d0] sm:$0xff]
    %v702 = vld [vmem:[#allocation3 + $0x2d8] sm:$0xff]
    %v703 = vld [vmem:[#allocation3 + $0x2e0] sm:$0xff]
    %v704 = vld [vmem:[#allocation3 + $0x2e8] sm:$0xff]
    %v705 = vld [vmem:[#allocation3 + $0x2f0] sm:$0xff]
    %v706 = vld [vmem:[#allocation3 + $0x2f8] sm:$0xff]
    %v707 = vld [vmem:[%s10] sm:$0x3]
    %v709 = vlaneseq
    %v710 = vshrl.u32 %v709, 7
    %v711 = vsub.s32 0, %v710
    %v712 = vrot.slane %v707, %v711
    %v713 = vlaneseq
    %v714 = vshrl.u32 %v713, 7
    %v715 = vsub.s32 1, %v714
    %v716 = vrot.slane %v707, %v715
    %719 = vmatprep.subr.bf16.mxu0 %v612
    %720 = vmatpush1.bf16.xpose.msra.mxu0 %v611
    %721 = vmatprep.subr.bf16.mxu0 %v618
    %722 = vmatpush1.bf16.xpose.msra.mxu0 %v617
    %723 = vmatprep.subr.bf16.mxu0 %v624
    %724 = vmatpush1.bf16.xpose.msra.mxu0 %v623
    %725 = vmatprep.subr.bf16.mxu0 %v630
    %726 = vmatpush1.bf16.xpose.msra.mxu0 %v629
    %727 = vmatprep.subr.bf16.mxu0 %v636
    %728 = vmatpush1.bf16.xpose.msra.mxu0 %v635
    %729 = vmatprep.subr.bf16.mxu0 %v642
    %730 = vmatpush1.bf16.xpose.msra.mxu0 %v641
    %731 = vmatprep.subr.bf16.mxu0 %v648
    %732 = vmatpush1.bf16.xpose.msra.mxu0 %v647
    %733 = vmatprep.subr.bf16.mxu0 %v654
    %734 = vmatpush1.bf16.xpose.msra.mxu0 %v653
    %735 = vmatprep.subr.bf16.mxu0 %v660
    %736 = vmatpush1.bf16.xpose.msra.mxu0 %v659
    %737 = vmatprep.subr.bf16.mxu0 %v666
    %738 = vmatpush1.bf16.xpose.msra.mxu0 %v665
    %739 = vmatprep.subr.bf16.mxu0 %v672
    %740 = vmatpush1.bf16.xpose.msra.mxu0 %v671
    %741 = vmatprep.subr.bf16.mxu0 %v678
    %742 = vmatpush1.bf16.xpose.msra.mxu0 %v677
    %743 = vmatprep.subr.bf16.mxu0 %v684
    %744 = vmatpush1.bf16.xpose.msra.mxu0 %v683
    %745 = vmatprep.subr.bf16.mxu0 %v690
    %746 = vmatpush1.bf16.xpose.msra.mxu0 %v689
    %747 = vmatprep.subr.bf16.mxu0 %v696
    %748 = vmatpush1.bf16.xpose.msra.mxu0 %v695
    %749 = vmatprep.subr.bf16.mxu0 %v702
    %750 = vmatpush1.bf16.xpose.msra.mxu0 %v701
    %751 = vmatprep.mubr.bf16.mxu0 %v369
    %752 = vmatmul.mubr.bf16.gmra.mrb[0].mxu0 %v368
    %v753 = vpop.f32.mrb[0].mxu0
    %v754 = vadd.f32 %v712, %v753
    %v755 = vpop.f32.mrb[0].mxu0
    %v756 = vadd.f32 %v716, %v755
    %v757 = vpop.f32.mrb[0].mxu0
    %v758 = vpop.f32.mrb[0].mxu0
    %759 = vdwg.mxu0
    %760 = vmatprep.subr.bf16.mxu0 %v614
    %761 = vmatpush1.bf16.xpose.msra.mxu0 %v613
    %762 = vmatprep.subr.bf16.mxu0 %v620
    %763 = vmatpush1.bf16.xpose.msra.mxu0 %v619
    %764 = vmatprep.subr.bf16.mxu0 %v626
    %765 = vmatpush1.bf16.xpose.msra.mxu0 %v625
    %766 = vmatprep.subr.bf16.mxu0 %v632
    %767 = vmatpush1.bf16.xpose.msra.mxu0 %v631
    %768 = vmatprep.subr.bf16.mxu0 %v638
    %769 = vmatpush1.bf16.xpose.msra.mxu0 %v637
    %770 = vmatprep.subr.bf16.mxu0 %v644
    %771 = vmatpush1.bf16.xpose.msra.mxu0 %v643
    %772 = vmatprep.subr.bf16.mxu0 %v650
    %773 = vmatpush1.bf16.xpose.msra.mxu0 %v649
    %774 = vmatprep.subr.bf16.mxu0 %v656
    %775 = vmatpush1.bf16.xpose.msra.mxu0 %v655
    %776 = vmatprep.subr.bf16.mxu0 %v662
    %777 = vmatpush1.bf16.xpose.msra.mxu0 %v661
    %778 = vmatprep.subr.bf16.mxu0 %v668
    %779 = vmatpush1.bf16.xpose.msra.mxu0 %v667
    %780 = vmatprep.subr.bf16.mxu0 %v674
    %781 = vmatpush1.bf16.xpose.msra.mxu0 %v673
    %782 = vmatprep.subr.bf16.mxu0 %v680
    %783 = vmatpush1.bf16.xpose.msra.mxu0 %v679
    %784 = vmatprep.subr.bf16.mxu0 %v686
    %785 = vmatpush1.bf16.xpose.msra.mxu0 %v685
    %786 = vmatprep.subr.bf16.mxu0 %v692
    %787 = vmatpush1.bf16.xpose.msra.mxu0 %v691
    %788 = vmatprep.subr.bf16.mxu0 %v698
    %789 = vmatpush1.bf16.xpose.msra.mxu0 %v697
    %790 = vmatprep.subr.bf16.mxu0 %v704
    %791 = vmatpush1.bf16.xpose.msra.mxu0 %v703
    %792 = vmatprep.mubr.bf16.mxu0 %v371
    %793 = vmatmul.mubr.bf16.gmra.mrb[0].mxu0 %v370
    %v794 = vpop.f32.mrb[0].mxu0
    %v795 = vadd.f32 %v754, %v794
    %v796 = vpop.f32.mrb[0].mxu0
    %v797 = vadd.f32 %v756, %v796
    %v798 = vpop.f32.mrb[0].mxu0
    %v799 = vpop.f32.mrb[0].mxu0
    %800 = vdwg.mxu0
    %801 = vmatprep.subr.bf16.mxu0 %v616
    %802 = vmatpush1.bf16.xpose.msra.mxu0 %v615
    %803 = vmatprep.subr.bf16.mxu0 %v622
    %804 = vmatpush1.bf16.xpose.msra.mxu0 %v621
    %805 = vmatprep.subr.bf16.mxu0 %v628
    %806 = vmatpush1.bf16.xpose.msra.mxu0 %v627
    %807 = vmatprep.subr.bf16.mxu0 %v634
    %808 = vmatpush1.bf16.xpose.msra.mxu0 %v633
    %809 = vmatprep.subr.bf16.mxu0 %v640
    %810 = vmatpush1.bf16.xpose.msra.mxu0 %v639
    %811 = vmatprep.subr.bf16.mxu0 %v646
    %812 = vmatpush1.bf16.xpose.msra.mxu0 %v645
    %813 = vmatprep.subr.bf16.mxu0 %v652
    %814 = vmatpush1.bf16.xpose.msra.mxu0 %v651
    %815 = vmatprep.subr.bf16.mxu0 %v658
    %816 = vmatpush1.bf16.xpose.msra.mxu0 %v657
    %817 = vmatprep.subr.bf16.mxu0 %v664
    %818 = vmatpush1.bf16.xpose.msra.mxu0 %v663
    %819 = vmatprep.subr.bf16.mxu0 %v670
    %820 = vmatpush1.bf16.xpose.msra.mxu0 %v669
    %821 = vmatprep.subr.bf16.mxu0 %v676
    %822 = vmatpush1.bf16.xpose.msra.mxu0 %v675
    %823 = vmatprep.subr.bf16.mxu0 %v682
    %824 = vmatpush1.bf16.xpose.msra.mxu0 %v681
    %825 = vmatprep.subr.bf16.mxu0 %v688
    %826 = vmatpush1.bf16.xpose.msra.mxu0 %v687
    %827 = vmatprep.subr.bf16.mxu0 %v694
    %828 = vmatpush1.bf16.xpose.msra.mxu0 %v693
    %829 = vmatprep.subr.bf16.mxu0 %v700
    %830 = vmatpush1.bf16.xpose.msra.mxu0 %v699
    %831 = vmatprep.subr.bf16.mxu0 %v706
    %832 = vmatpush1.bf16.xpose.msra.mxu0 %v705
    %833 = vmatprep.mubr.bf16.mxu0 %v373
    %834 = vmatmul.mubr.bf16.gmra.mrb[0].mxu0 %v372
    %v835 = vpop.f32.mrb[0].mxu0
    %v836 = vadd.f32 %v795, %v835
    %v837 = vpop.f32.mrb[0].mxu0
    %v838 = vadd.f32 %v797, %v837
    %v839 = vpop.f32.mrb[0].mxu0
    %v840 = vpop.f32.mrb[0].mxu0
    %841 = vdwg.mxu0
    %v842 = vmul.f32 %v605, %v605
    %v843 = vmul.f32 %v607, %v607
    %v844 = vadd.f32 %v842, %v843
    %845 = vadd.xlane.f32.xlu0 %v844
    %v846 = vpop.xlane.xlu0 %845
    %v847 = vmax.f32 %v846, 1e-24
    %v848 = vrsqrt.pop %v847
    %v849 = vmul.f32 %v605, %v848
    %v850 = vmul.f32 %v607, %v848
    %v851 = vmul.f32 %v836, %v836
    %v852 = vmul.f32 %v838, %v838
    %v853 = vadd.f32 %v851, %v852
    %854 = vadd.xlane.f32.xlu0 %v853
    %v855 = vpop.xlane.xlu0 %854
    %v856 = vmax.f32 %v855, 1e-24
    %v857 = vrsqrt.pop %v856
    %v858 = vmul.f32 %v836, %v857
    %v859 = vmul.f32 %v838, %v857
    %860 = vmatprep.subr.mxu0 %v172
    %861 = vmatpush1.xpose.msra.mxu0 %v171
    %862 = vmatprep.subr.mxu0 0.0
    %863 = vmatpush1.xpose.msra.mxu0 0.0
    %864 = vmatprep.subr.mxu0 0.0
    %865 = vmatpush1.xpose.msra.mxu0 0.0
    %866 = vmatprep.subr.mxu0 0.0
    %867 = vmatpush1.xpose.msra.mxu0 0.0
    %868 = vmatprep.subr.mxu0 0.0
    %869 = vmatpush1.xpose.msra.mxu0 0.0
    %870 = vmatprep.subr.mxu0 0.0
    %871 = vmatpush1.xpose.msra.mxu0 0.0
    %872 = vmatprep.subr.mxu0 0.0
    %873 = vmatpush1.xpose.msra.mxu0 0.0
    %874 = vmatprep.subr.mxu0 0.0
    %875 = vmatpush1.xpose.msra.mxu0 0.0
    %876 = vmatprep.subr.mxu0 0.0
    %877 = vmatpush1.xpose.msra.mxu0 0.0
    %878 = vmatprep.subr.mxu0 0.0
    %879 = vmatpush1.xpose.msra.mxu0 0.0
    %880 = vmatprep.subr.mxu0 0.0
    %881 = vmatpush1.xpose.msra.mxu0 0.0
    %882 = vmatprep.subr.mxu0 0.0
    %883 = vmatpush1.xpose.msra.mxu0 0.0
    %884 = vmatprep.subr.mxu0 0.0
    %885 = vmatpush1.xpose.msra.mxu0 0.0
    %886 = vmatprep.subr.mxu0 0.0
    %887 = vmatpush1.xpose.msra.mxu0 0.0
    %888 = vmatprep.subr.mxu0 0.0
    %889 = vmatpush1.xpose.msra.mxu0 0.0
    %890 = vmatprep.subr.mxu0 0.0
    %891 = vmatpush1.xpose.msra.mxu0 0.0
    %892 = vmatprep.subr.mxu0 0.0
    %893 = vmatpush1.xpose.msra.mxu0 0.0
    %894 = vmatprep.subr.mxu0 0.0
    %895 = vmatpush1.xpose.msra.mxu0 0.0
    %896 = vmatprep.subr.mxu0 0.0
    %897 = vmatpush1.xpose.msra.mxu0 0.0
    %898 = vmatprep.subr.mxu0 0.0
    %899 = vmatpush1.xpose.msra.mxu0 0.0
    %900 = vmatprep.subr.mxu0 0.0
    %901 = vmatpush1.xpose.msra.mxu0 0.0
    %902 = vmatprep.subr.mxu0 0.0
    %903 = vmatpush1.xpose.msra.mxu0 0.0
    %904 = vmatprep.subr.mxu0 0.0
    %905 = vmatpush1.xpose.msra.mxu0 0.0
    %906 = vmatprep.subr.mxu0 0.0
    %907 = vmatpush1.xpose.msra.mxu0 0.0
    %908 = vmatprep.subr.mxu0 0.0
    %909 = vmatpush1.xpose.msra.mxu0 0.0
    %910 = vmatprep.subr.mxu0 0.0
    %911 = vmatpush1.xpose.msra.mxu0 0.0
    %912 = vmatprep.subr.mxu0 0.0
    %913 = vmatpush1.xpose.msra.mxu0 0.0
    %914 = vmatprep.subr.mxu0 0.0
    %915 = vmatpush1.xpose.msra.mxu0 0.0
    %916 = vmatprep.subr.mxu0 0.0
    %917 = vmatpush1.xpose.msra.mxu0 0.0
    %918 = vmatprep.subr.mxu0 0.0
    %919 = vmatpush1.xpose.msra.mxu0 0.0
    %920 = vmatprep.subr.mxu0 0.0
    %921 = vmatpush1.xpose.msra.mxu0 0.0
    %922 = vmatprep.subr.mxu0 0.0
    %923 = vmatpush1.xpose.msra.mxu0 0.0
    %924 = vmatprep.mubr.f32.mxu0 %v850
    %925 = vmatmul.mubr.f32.gmra.mrb[0].mxu0 %v849
    %v926 = vpop.f32.mrb[0].mxu0
    %v927 = vadd.f32 0.0, %v926
    %v928 = vpop.f32.mrb[0].mxu0
    %929 = vdwg.mxu0
    %v930 = vmul.f32 %v927, 14.285714
    %931 = vmatprep.subr.mxu0 %v183
    %932 = vmatpush1.xpose.msra.mxu0 %v182
    %933 = vmatprep.subr.mxu0 0.0
    %934 = vmatpush1.xpose.msra.mxu0 0.0
    %935 = vmatprep.subr.mxu0 0.0
    %936 = vmatpush1.xpose.msra.mxu0 0.0
    %937 = vmatprep.subr.mxu0 0.0
    %938 = vmatpush1.xpose.msra.mxu0 0.0
    %939 = vmatprep.subr.mxu0 0.0
    %940 = vmatpush1.xpose.msra.mxu0 0.0
    %941 = vmatprep.subr.mxu0 0.0
    %942 = vmatpush1.xpose.msra.mxu0 0.0
    %943 = vmatprep.subr.mxu0 0.0
    %944 = vmatpush1.xpose.msra.mxu0 0.0
    %945 = vmatprep.subr.mxu0 0.0
    %946 = vmatpush1.xpose.msra.mxu0 0.0
    %947 = vmatprep.subr.mxu0 0.0
    %948 = vmatpush1.xpose.msra.mxu0 0.0
    %949 = vmatprep.subr.mxu0 0.0
    %950 = vmatpush1.xpose.msra.mxu0 0.0
    %951 = vmatprep.subr.mxu0 0.0
    %952 = vmatpush1.xpose.msra.mxu0 0.0
    %953 = vmatprep.subr.mxu0 0.0
    %954 = vmatpush1.xpose.msra.mxu0 0.0
    %955 = vmatprep.subr.mxu0 0.0
    %956 = vmatpush1.xpose.msra.mxu0 0.0
    %957 = vmatprep.subr.mxu0 0.0
    %958 = vmatpush1.xpose.msra.mxu0 0.0
    %959 = vmatprep.subr.mxu0 0.0
    %960 = vmatpush1.xpose.msra.mxu0 0.0
    %961 = vmatprep.subr.mxu0 0.0
    %962 = vmatpush1.xpose.msra.mxu0 0.0
    %963 = vmatprep.subr.mxu0 0.0
    %964 = vmatpush1.xpose.msra.mxu0 0.0
    %965 = vmatprep.subr.mxu0 0.0
    %966 = vmatpush1.xpose.msra.mxu0 0.0
    %967 = vmatprep.subr.mxu0 0.0
    %968 = vmatpush1.xpose.msra.mxu0 0.0
    %969 = vmatprep.subr.mxu0 0.0
    %970 = vmatpush1.xpose.msra.mxu0 0.0
    %971 = vmatprep.subr.mxu0 0.0
    %972 = vmatpush1.xpose.msra.mxu0 0.0
    %973 = vmatprep.subr.mxu0 0.0
    %974 = vmatpush1.xpose.msra.mxu0 0.0
    %975 = vmatprep.subr.mxu0 0.0
    %976 = vmatpush1.xpose.msra.mxu0 0.0
    %977 = vmatprep.subr.mxu0 0.0
    %978 = vmatpush1.xpose.msra.mxu0 0.0
    %979 = vmatprep.subr.mxu0 0.0
    %980 = vmatpush1.xpose.msra.mxu0 0.0
    %981 = vmatprep.subr.mxu0 0.0
    %982 = vmatpush1.xpose.msra.mxu0 0.0
    %983 = vmatprep.subr.mxu0 0.0
    %984 = vmatpush1.xpose.msra.mxu0 0.0
    %985 = vmatprep.subr.mxu0 0.0
    %986 = vmatpush1.xpose.msra.mxu0 0.0
    %987 = vmatprep.subr.mxu0 0.0
    %988 = vmatpush1.xpose.msra.mxu0 0.0
    %989 = vmatprep.subr.mxu0 0.0
    %990 = vmatpush1.xpose.msra.mxu0 0.0
    %991 = vmatprep.subr.mxu0 0.0
    %992 = vmatpush1.xpose.msra.mxu0 0.0
    %993 = vmatprep.subr.mxu0 0.0
    %994 = vmatpush1.xpose.msra.mxu0 0.0
    %995 = vmatprep.mubr.f32.mxu0 %v859
    %996 = vmatmul.mubr.f32.gmra.mrb[0].mxu0 %v858
    %v997 = vpop.f32.mrb[0].mxu0
    %v998 = vadd.f32 0.0, %v997
    %v999 = vpop.f32.mrb[0].mxu0
    %1000 = vdwg.mxu0
    %v1001 = vmul.f32 %v998, 14.285714
    %v1002 = vmul.f32 %v849, %v171
    %v1003 = vmul.f32 %v850, %v172
    %v1004 = vadd.f32 %v1002, %v1003
    %1005 = vadd.xlane.f32.xlu0 %v1004
    %v1006 = vpop.xlane.xlu0 %1005
    %v1007 = vadd.f32 %v1006, 0.0
    %v1008 = vrot.slane %v1007, 4
    %v1009 = vadd.f32 %v1007, %v1008
    %v1010 = vrot.slane %v1009, 2
    %v1011 = vadd.f32 %v1009, %v1010
    %v1012 = vrot.slane %v1011, 1
    %v1013 = vadd.f32 %v1011, %v1012
    %v1014 = vmul.f32 %v1013, 14.285714
    %v1015 = vmul.f32 %v858, %v182
    %v1016 = vmul.f32 %v859, %v183
    %v1017 = vadd.f32 %v1015, %v1016
    %1018 = vadd.xlane.f32.xlu0 %v1017
    %v1019 = vpop.xlane.xlu0 %1018
    %v1020 = vadd.f32 %v1019, 0.0
    %v1021 = vrot.slane %v1020, 4
    %v1022 = vadd.f32 %v1020, %v1021
    %v1023 = vrot.slane %v1022, 2
    %v1024 = vadd.f32 %v1022, %v1023
    %v1025 = vrot.slane %v1024, 1
    %v1026 = vadd.f32 %v1024, %v1025
    %v1027 = vmul.f32 %v1026, 14.285714
    %v1028 = vsel %vm268, %v930, -inf
    %1029 = vmax.xlane.f32.xlu0 %v1028
    %v1030 = vpop.xlane.xlu0 %1029
    %v1031 = vsub.f32 %v930, %v1030
    %v1032 = vmul.f32 %v1031, 1.442695
    %v1033 = vpow.pop %v1032
    %v1034 = vsel %vm268, %v1033, 0.0
    %1035 = vadd.xlane.f32.xlu0 %v1034
    %v1036 = vpop.xlane.xlu0 %1035
    %v1037 = vlog2.pop %v1036
    %v1038 = vmul.f32 %v1037, 0.6931472
    %v1039 = vadd.f32 %v1038, %v1030
    %v1040 = vadd.f32 %v1039, 0.0
    %v1041 = vrot.slane %v1040, 4
    %v1042 = vadd.f32 %v1040, %v1041
    %v1043 = vrot.slane %v1042, 2
    %v1044 = vadd.f32 %v1042, %v1043
    %v1045 = vrot.slane %v1044, 1
    %v1046 = vadd.f32 %v1044, %v1045
    %v1047 = vsub.f32 %v1046, %v1014
    %v1048 = vmul.f32 %v1047, %v348
    %v1049 = vsel %vm268, %v1001, -inf
    %1050 = vmax.xlane.f32.xlu0 %v1049
    %v1051 = vpop.xlane.xlu0 %1050
    %v1052 = vsub.f32 %v1001, %v1051
    %v1053 = vmul.f32 %v1052, 1.442695
    %v1054 = vpow.pop %v1053
    %v1055 = vsel %vm268, %v1054, 0.0
    %1056 = vadd.xlane.f32.xlu0 %v1055
    %v1057 = vpop.xlane.xlu0 %1056
    %v1058 = vlog2.pop %v1057
    %v1059 = vmul.f32 %v1058, 0.6931472
    %v1060 = vadd.f32 %v1059, %v1051
    %v1061 = vadd.f32 %v1060, 0.0
    %v1062 = vrot.slane %v1061, 4
    %v1063 = vadd.f32 %v1061, %v1062
    %v1064 = vrot.slane %v1063, 2
    %v1065 = vadd.f32 %v1063, %v1064
    %v1066 = vrot.slane %v1065, 1
    %v1067 = vadd.f32 %v1065, %v1066
    %v1068 = vsub.f32 %v1067, %v1027
    %v1069 = vmul.f32 %v1068, %v348
    %vm1070 = vcmp.eq.s32.totalorder %v331, 0
    %v1071 = vsel %vm1070, %v314, 0.0
    %vm1072 = vcmp.eq.s32.totalorder %v331, 1
    %v1073 = vsel %vm1072, %v349, 0.0
    %v1074 = vadd.f32 %v1071, %v1073
    %vm1075 = vcmp.eq.s32.totalorder %v331, 2
    %v1076 = vsel %vm1075, %v1048, 0.0
    %v1077 = vadd.f32 %v1074, %v1076
    %vm1078 = vcmp.eq.s32.totalorder %v331, 3
    %v1079 = vsel %vm1078, %v1069, 0.0
    %v1080 = vadd.f32 %v1077, %v1079
    %vm1081 = vcmask 57344
    %1082 = vst.msk [vmem:[%s11] sm:$0x1] %vm1081, %v1080
    // Predicated region
    $region54: #{advanced_loss.1} parent=1 // pred_check
      _
    $region55: #{advanced_loss.1} parent=1 // pred_check_branch
      %1084 = sbr.rel (0) target = $region57
    $region56: #{advanced_loss.1} parent=1 // pred_region
      _
    $region57: #{advanced_loss.1} parent=1 // pred_fallthru
      _
    // Predicated region
    $region58: #{advanced_loss.1} parent=1 // pred_check
      _
    $region59: #{advanced_loss.1} parent=1 // pred_check_branch
      %1086 = sbr.rel (0) target = $region61
    $region60: #{advanced_loss.1} parent=1 // pred_region
      _
    $region61: #{advanced_loss.1} parent=1 // pred_fallthru
      _
    %1087 = vsyncpa [#allocation6], 1
    %1088 = vsyncpa [#allocation8], 1
    %1089 = vsyncpa [#allocation11], 1
  %1090 = vsyncmov [#allocation4]
  %s1091 = vpop.sfrf %1090
  %p1092 = scmp.eq.s32.totalorder %s1091, 0
  %p1093 = pneg %p1092
  %1095 = shalt.err (%p1093)
  %s1096 = scalar_lea.sflag [#allocation4], 1
  %1097 = vsyncmov %s1096
  %s1098 = vpop.sfrf %1097
  %p1099 = scmp.eq.s32.totalorder %s1098, 0
  %p1100 = pneg %p1099
  %1102 = shalt.err (%p1100)

</llo_original>
